<compile_context>
chip_gen: v7x
topology: tpu7x:2x2x1
jax: 0.10.0
libtpu: 0.0.40
codegen_flags: <defaults>
</compile_context>

<pallas_src>
import functools

import jax
import jax.numpy as jnp
from jax import lax
from jax.experimental import pallas as pl
from jax.experimental.pallas import tpu as pltpu

BETA = 0.9        # LIF membrane decay
THRESH = 1.0      # LIF firing threshold
LANE = 128


def _round_up(v, m):
    return (v + m - 1) // m * m


def model_kernel(x_ref, w_enc_ref, b_enc_ref, w_dec_ref, b_dec_ref, out_ref,
                 *, unroll):
    # x_ref   : [T, Bt, Din]  time-major input block
    # w_enc   : [Din, Hp] (matmul dtype), b_enc: [1, Hp] f32   (H lane-padded, zeros)
    # w_dec   : [Hp, Cp]  (matmul dtype), b_dec: [1, Cp] f32   (padded class lanes = -1e30)
    # out_ref : [Bt, Cp]   lane-dense padded log-probs
    T, Bt, _ = x_ref.shape
    Hp = w_enc_ref.shape[1]

    w_enc = w_enc_ref[...]                       # stays in MXU feed dtype
    b_enc = b_enc_ref[...].astype(jnp.float32)
    mm_dtype = w_enc.dtype

    # ---- snn: LIF recurrence with the encoder matmul folded into each step.
    # No [T,Bt,Hp] activation ever touches VMEM; the [Bt,Din]@[Din,Hp] dot uses
    # the otherwise-idle MXU slot while the VPU does the membrane update.
    # Padded H lanes carry zero current -> never cross THRESH -> zero spikes.
    # (For very large H an additional "arbitrary" H grid axis would keep state
    #  in vregs; unnecessary at these hidden sizes.)
    def step(t, carry):
        v, s = carry
        cur_t = jnp.dot(x_ref[t].astype(mm_dtype), w_enc,
                        preferred_element_type=jnp.float32) + b_enc
        v = BETA * v + cur_t
        spk = (v > THRESH).astype(jnp.float32)
        v = v - spk * THRESH                     # soft reset
        return v, s + spk

    zeros = jnp.zeros((Bt, Hp), jnp.float32)
    _, spk_sum = lax.fori_loop(0, T, step, (zeros, zeros), unroll=unroll)

    # ---- decoder: lane-dense matmul + stabilized log_softmax.
    # Padded class lanes get the -1e30 baked into b_dec -> exp() == 0 exactly.
    logits = jnp.dot(spk_sum.astype(mm_dtype), w_dec_ref[...],
                     preferred_element_type=jnp.float32)     # [Bt, Cp]
    logits = logits + b_dec_ref[...].astype(jnp.float32)
    m = jnp.max(logits, axis=-1, keepdims=True)
    z = logits - m
    lse = jnp.log(jnp.sum(jnp.exp(z), axis=-1, keepdims=True))
    out_ref[...] = (z - lse).astype(out_ref.dtype)


def model_forward(x, w_enc, b_enc, w_dec, b_dec, *, b_tile=None,
                  matmul_dtype=jnp.float32):
    B, T, Din = x.shape
    H = w_enc.shape[1]
    C = w_dec.shape[1]
    Hp = _round_up(H, LANE)
    Cp = _round_up(C, LANE)

    mm = jnp.dtype(matmul_dtype)

    # Lane-padded parameters; weights pre-cast to the MXU feed dtype in the
    # wrapper (no per-grid-step cast in the kernel), biases stay f32.  Padded
    # encoder lanes carry zero weight/bias -> never spike.  The class mask is
    # baked into the decoder bias: padded class lanes get -1e30.
    w_enc_p = jnp.zeros((Din, Hp), mm).at[:, :H].set(w_enc.astype(mm))
    b_enc_p = jnp.zeros((1, Hp), jnp.float32).at[:, :H].set(
        b_enc.reshape(1, H).astype(jnp.float32))
    w_dec_p = jnp.zeros((Hp, Cp), mm).at[:H, :C].set(w_dec.astype(mm))
    b_dec_p = jnp.full((1, Cp), -1e30, jnp.float32).at[:, :C].set(
        b_dec.reshape(1, C).astype(jnp.float32))

    # Time-major so the per-timestep slice inside the LIF loop is a cheap
    # leading-axis view.
    x_tm = jnp.transpose(x, (1, 0, 2)).astype(mm)            # [T, B, Din]

    # ---- VMEM- and megacore-aware batch-tile selection ---------------------
    try:
        vmem_cap = int(pltpu.get_tpu_info().vmem_capacity_bytes)
    except Exception:
        vmem_cap = 64 * 1024 * 1024                          # v7x per-TC floor
    vmem_budget = (vmem_cap * 3) // 4                        # compiler headroom

    def est_bytes(bt):
        return (2 * T * bt * Din * mm.itemsize               # x block (double-buffered)
                + (Din * Hp + Hp * Cp) * mm.itemsize         # weights (single-buffered)
                + (Hp + Cp) * 4                              # biases
                + 2 * bt * Cp * 4                            # out block (double-buffered)
                + 4 * bt * Hp * 4)                           # v / spk_sum / cur_t + slack

    if b_tile is None:
        b_tile = 8
        for cand in (128, 64, 32, 16):                       # largest tile that fits
            if 2 * est_bytes(cand) <= vmem_budget:           # 2x fudge for temporaries
                b_tile = cand
                break
        # Keep >= 2 batch blocks whenever the batch allows it, so the
        # "parallel" grid axis can shard across both v7x TensorCores.
        while b_tile > 8 and B <= b_tile:
            b_tile //= 2
    assert b_tile % 8 == 0

    Bp = _round_up(B, b_tile)                                # pad awkward batch sizes
    if Bp != B:
        x_tm = jnp.pad(x_tm, ((0, 0), (0, Bp - B), (0, 0)))
    grid = (Bp // b_tile,)

    vmem_limit = int(min(vmem_budget,
                         max(4 * 1024 * 1024, 2 * est_bytes(b_tile))))

    kernel = functools.partial(model_kernel,
                               unroll=(True if T <= 16 else 8))

    def run(single_buffer_weights):
        if single_buffer_weights:
            # Constant-index weight blocks never change across the grid, so
            # double-buffering them only wastes VMEM (matters for large H).
            def wspec(shape):
                return pl.BlockSpec(shape, lambda b: (0, 0),
                                    pipeline_mode=pl.Buffered(buffer_count=1))
        else:
            def wspec(shape):
                return pl.BlockSpec(shape, lambda b: (0, 0))
        return pl.pallas_call(
            kernel,
            out_shape=jax.ShapeDtypeStruct((Bp, Cp), jnp.float32),
            grid_spec=pltpu.PrefetchScalarGridSpec(
                num_scalar_prefetch=0,
                grid=grid,
                in_specs=[
                    pl.BlockSpec((T, b_tile, Din), lambda b: (0, b, 0)),
                    wspec((Din, Hp)),
                    wspec((1, Hp)),
                    wspec((Hp, Cp)),
                    wspec((1, Cp)),
                ],
                out_specs=pl.BlockSpec((b_tile, Cp), lambda b: (b, 0)),
            ),
            compiler_params=pltpu.CompilerParams(
                dimension_semantics=("parallel",),
                vmem_limit_bytes=vmem_limit,
            ),
        )(x_tm, w_enc_p, b_enc_p, w_dec_p, b_dec_p)

    try:
        out_padded = run(single_buffer_weights=True)
    except Exception:
        # Fallback if this JAX build rejects pipeline_mode=Buffered(1).
        out_padded = run(single_buffer_weights=False)

    return out_padded[:B, :C]


def reference_forward(x, w_enc, b_enc, w_dec, b_dec):
    """Pure-JAX reference for sanity checking."""
    B, T, Din = x.shape
    cur = jnp.einsum("btd,dh->bth", x.astype(jnp.float32), w_enc) + b_enc[0]
    v = jnp.zeros((B, w_enc.shape[1]), jnp.float32)
    s = jnp.zeros_like(v)
    for t in range(T):
        v = BETA * v + cur[:, t, :]
        spk = (v > THRESH).astype(jnp.float32)
        v = v - spk * THRESH
        s = s + spk
    logits = s @ w_dec + b_dec[0]
    return jax.nn.log_softmax(logits, axis=-1)


if __name__ == "__main__":
    # Small shapes: batch=2, time=8, input=16, hidden=32, classes=10.
    B, T, D_IN, H, C = 2, 8, 16, 32, 10

    key = jax.random.PRNGKey(0)
    k_x, k_we, k_be, k_wd, k_bd = jax.random.split(key, 5)

    x = jax.random.normal(k_x, (B, T, D_IN), dtype=jnp.float32)
    w_enc = 0.5 * jax.random.normal(k_we, (D_IN, H), dtype=jnp.float32)
    b_enc = 0.1 * jax.random.normal(k_be, (1, H), dtype=jnp.float32)
    w_dec = 0.5 * jax.random.normal(k_wd, (H, C), dtype=jnp.float32)
    b_dec = 0.1 * jax.random.normal(k_bd, (1, C), dtype=jnp.float32)

    log_p_y = model_forward(x, w_enc, b_enc, w_dec, b_dec)
    jax.block_until_ready(log_p_y)

    ref = reference_forward(x, w_enc, b_enc, w_dec, b_dec)
    assert log_p_y.shape == (B, C)
    assert jnp.allclose(log_p_y, ref, atol=1e-4, rtol=1e-4), "mismatch vs reference"

    print("KERNEL_OK")
</pallas_src>

<mosaic_0001>
module attributes {stable_mosaic.version = 11 : i64} {
  func.func @model_kernel(%arg0: i32, %arg1: memref<8x8x16xf32, #tpu.memory_space<vmem>>, %arg2: memref<16x128xf32, #tpu.memory_space<vmem>>, %arg3: memref<1x128xf32, #tpu.memory_space<vmem>>, %arg4: memref<128x128xf32, #tpu.memory_space<vmem>>, %arg5: memref<1x128xf32, #tpu.memory_space<vmem>>, %arg6: memref<8x128xf32, #tpu.memory_space<vmem>>) attributes {dimension_semantics = [#tpu.dimension_semantics<parallel>], iteration_bounds = array<i64: 1>, scalar_prefetch = 0 : i64, scratch_operands = 0 : i64, tpu.core_type = #tpu.core_type<tc>, window_params = [{transform_indices = @transform_0, window_bounds = array<i64: 8, 8, 16>}, {pipeline_mode = #tpu.pipeline_mode<synchronous>, transform_indices = @transform_1, window_bounds = array<i64: 16, 128>}, {pipeline_mode = #tpu.pipeline_mode<synchronous>, transform_indices = @transform_2, window_bounds = array<i64: 1, 128>}, {pipeline_mode = #tpu.pipeline_mode<synchronous>, transform_indices = @transform_3, window_bounds = array<i64: 128, 128>}, {pipeline_mode = #tpu.pipeline_mode<synchronous>, transform_indices = @transform_4, window_bounds = array<i64: 1, 128>}, {transform_indices = @transform_5, window_bounds = array<i64: 8, 128>}]} {
    %c0 = arith.constant 0 : index
    %c0_0 = arith.constant 0 : index
    %0 = vector.load %arg2[%c0, %c0_0] : memref<16x128xf32, #tpu.memory_space<vmem>>, vector<16x128xf32>
    %c0_1 = arith.constant 0 : index
    %c0_2 = arith.constant 0 : index
    %1 = vector.load %arg3[%c0_1, %c0_2] : memref<1x128xf32, #tpu.memory_space<vmem>>, vector<1x128xf32>
    %cst = arith.constant 0.000000e+00 : f32
    %2 = vector.broadcast %cst : f32 to vector<8x128xf32>
    %c0_i32 = arith.constant 0 : i32
    %3 = arith.index_cast %c0_i32 : i32 to index
    %c0_3 = arith.constant 0 : index
    %c0_4 = arith.constant 0 : index
    %4 = vector.load %arg1[%3, %c0_3, %c0_4] : memref<8x8x16xf32, #tpu.memory_space<vmem>>, vector<1x8x16xf32>
    %5 = vector.shape_cast %4 : vector<1x8x16xf32> to vector<8x16xf32>
    %cst_5 = arith.constant dense<0.000000e+00> : vector<8x128xf32>
    %6 = tpu.matmul %5, %0, %cst_5 {dimension_numbers = #tpu.dot_dimension_numbers<[1], [0], [0], [1], [0, 0, 1, 1], [], []>} : vector<8x16xf32>, vector<16x128xf32>, vector<8x128xf32> -> vector<8x128xf32>
    %7 = vector.broadcast %1 : vector<1x128xf32> to vector<8x128xf32>
    %8 = arith.addf %6, %7 : vector<8x128xf32>
    %cst_6 = arith.constant 0.899999976 : f32
    %9 = vector.broadcast %cst_6 : f32 to vector<8x128xf32>
    %10 = arith.mulf %9, %2 : vector<8x128xf32>
    %11 = arith.addf %10, %8 : vector<8x128xf32>
    %cst_7 = arith.constant 1.000000e+00 : f32
    %12 = vector.broadcast %cst_7 : f32 to vector<8x128xf32>
    %13 = arith.cmpf ogt, %11, %12 : vector<8x128xf32>
    %14 = arith.extui %13 : vector<8x128xi1> to vector<8x128xi32>
    %15 = arith.sitofp %14 : vector<8x128xi32> to vector<8x128xf32>
    %cst_8 = arith.constant 1.000000e+00 : f32
    %16 = vector.broadcast %cst_8 : f32 to vector<8x128xf32>
    %17 = arith.mulf %15, %16 : vector<8x128xf32>
    %18 = arith.subf %11, %17 : vector<8x128xf32>
    %19 = arith.addf %2, %15 : vector<8x128xf32>
    %c1_i32 = arith.constant 1 : i32
    %20 = arith.index_cast %c1_i32 : i32 to index
    %c0_9 = arith.constant 0 : index
    %c0_10 = arith.constant 0 : index
    %21 = vector.load %arg1[%20, %c0_9, %c0_10] : memref<8x8x16xf32, #tpu.memory_space<vmem>>, vector<1x8x16xf32>
    %22 = vector.shape_cast %21 : vector<1x8x16xf32> to vector<8x16xf32>
    %cst_11 = arith.constant dense<0.000000e+00> : vector<8x128xf32>
    %23 = tpu.matmul %22, %0, %cst_11 {dimension_numbers = #tpu.dot_dimension_numbers<[1], [0], [0], [1], [0, 0, 1, 1], [], []>} : vector<8x16xf32>, vector<16x128xf32>, vector<8x128xf32> -> vector<8x128xf32>
    %24 = vector.broadcast %1 : vector<1x128xf32> to vector<8x128xf32>
    %25 = arith.addf %23, %24 : vector<8x128xf32>
    %cst_12 = arith.constant 0.899999976 : f32
    %26 = vector.broadcast %cst_12 : f32 to vector<8x128xf32>
    %27 = arith.mulf %26, %18 : vector<8x128xf32>
    %28 = arith.addf %27, %25 : vector<8x128xf32>
    %cst_13 = arith.constant 1.000000e+00 : f32
    %29 = vector.broadcast %cst_13 : f32 to vector<8x128xf32>
    %30 = arith.cmpf ogt, %28, %29 : vector<8x128xf32>
    %31 = arith.extui %30 : vector<8x128xi1> to vector<8x128xi32>
    %32 = arith.sitofp %31 : vector<8x128xi32> to vector<8x128xf32>
    %cst_14 = arith.constant 1.000000e+00 : f32
    %33 = vector.broadcast %cst_14 : f32 to vector<8x128xf32>
    %34 = arith.mulf %32, %33 : vector<8x128xf32>
    %35 = arith.subf %28, %34 : vector<8x128xf32>
    %36 = arith.addf %19, %32 : vector<8x128xf32>
    %c2_i32 = arith.constant 2 : i32
    %37 = arith.index_cast %c2_i32 : i32 to index
    %c0_15 = arith.constant 0 : index
    %c0_16 = arith.constant 0 : index
    %38 = vector.load %arg1[%37, %c0_15, %c0_16] : memref<8x8x16xf32, #tpu.memory_space<vmem>>, vector<1x8x16xf32>
    %39 = vector.shape_cast %38 : vector<1x8x16xf32> to vector<8x16xf32>
    %cst_17 = arith.constant dense<0.000000e+00> : vector<8x128xf32>
    %40 = tpu.matmul %39, %0, %cst_17 {dimension_numbers = #tpu.dot_dimension_numbers<[1], [0], [0], [1], [0, 0, 1, 1], [], []>} : vector<8x16xf32>, vector<16x128xf32>, vector<8x128xf32> -> vector<8x128xf32>
    %41 = vector.broadcast %1 : vector<1x128xf32> to vector<8x128xf32>
    %42 = arith.addf %40, %41 : vector<8x128xf32>
    %cst_18 = arith.constant 0.899999976 : f32
    %43 = vector.broadcast %cst_18 : f32 to vector<8x128xf32>
    %44 = arith.mulf %43, %35 : vector<8x128xf32>
    %45 = arith.addf %44, %42 : vector<8x128xf32>
    %cst_19 = arith.constant 1.000000e+00 : f32
    %46 = vector.broadcast %cst_19 : f32 to vector<8x128xf32>
    %47 = arith.cmpf ogt, %45, %46 : vector<8x128xf32>
    %48 = arith.extui %47 : vector<8x128xi1> to vector<8x128xi32>
    %49 = arith.sitofp %48 : vector<8x128xi32> to vector<8x128xf32>
    %cst_20 = arith.constant 1.000000e+00 : f32
    %50 = vector.broadcast %cst_20 : f32 to vector<8x128xf32>
    %51 = arith.mulf %49, %50 : vector<8x128xf32>
    %52 = arith.subf %45, %51 : vector<8x128xf32>
    %53 = arith.addf %36, %49 : vector<8x128xf32>
    %c3_i32 = arith.constant 3 : i32
    %54 = arith.index_cast %c3_i32 : i32 to index
    %c0_21 = arith.constant 0 : index
    %c0_22 = arith.constant 0 : index
    %55 = vector.load %arg1[%54, %c0_21, %c0_22] : memref<8x8x16xf32, #tpu.memory_space<vmem>>, vector<1x8x16xf32>
    %56 = vector.shape_cast %55 : vector<1x8x16xf32> to vector<8x16xf32>
    %cst_23 = arith.constant dense<0.000000e+00> : vector<8x128xf32>
    %57 = tpu.matmul %56, %0, %cst_23 {dimension_numbers = #tpu.dot_dimension_numbers<[1], [0], [0], [1], [0, 0, 1, 1], [], []>} : vector<8x16xf32>, vector<16x128xf32>, vector<8x128xf32> -> vector<8x128xf32>
    %58 = vector.broadcast %1 : vector<1x128xf32> to vector<8x128xf32>
    %59 = arith.addf %57, %58 : vector<8x128xf32>
    %cst_24 = arith.constant 0.899999976 : f32
    %60 = vector.broadcast %cst_24 : f32 to vector<8x128xf32>
    %61 = arith.mulf %60, %52 : vector<8x128xf32>
    %62 = arith.addf %61, %59 : vector<8x128xf32>
    %cst_25 = arith.constant 1.000000e+00 : f32
    %63 = vector.broadcast %cst_25 : f32 to vector<8x128xf32>
    %64 = arith.cmpf ogt, %62, %63 : vector<8x128xf32>
    %65 = arith.extui %64 : vector<8x128xi1> to vector<8x128xi32>
    %66 = arith.sitofp %65 : vector<8x128xi32> to vector<8x128xf32>
    %cst_26 = arith.constant 1.000000e+00 : f32
    %67 = vector.broadcast %cst_26 : f32 to vector<8x128xf32>
    %68 = arith.mulf %66, %67 : vector<8x128xf32>
    %69 = arith.subf %62, %68 : vector<8x128xf32>
    %70 = arith.addf %53, %66 : vector<8x128xf32>
    %c4_i32 = arith.constant 4 : i32
    %71 = arith.index_cast %c4_i32 : i32 to index
    %c0_27 = arith.constant 0 : index
    %c0_28 = arith.constant 0 : index
    %72 = vector.load %arg1[%71, %c0_27, %c0_28] : memref<8x8x16xf32, #tpu.memory_space<vmem>>, vector<1x8x16xf32>
    %73 = vector.shape_cast %72 : vector<1x8x16xf32> to vector<8x16xf32>
    %cst_29 = arith.constant dense<0.000000e+00> : vector<8x128xf32>
    %74 = tpu.matmul %73, %0, %cst_29 {dimension_numbers = #tpu.dot_dimension_numbers<[1], [0], [0], [1], [0, 0, 1, 1], [], []>} : vector<8x16xf32>, vector<16x128xf32>, vector<8x128xf32> -> vector<8x128xf32>
    %75 = vector.broadcast %1 : vector<1x128xf32> to vector<8x128xf32>
    %76 = arith.addf %74, %75 : vector<8x128xf32>
    %cst_30 = arith.constant 0.899999976 : f32
    %77 = vector.broadcast %cst_30 : f32 to vector<8x128xf32>
    %78 = arith.mulf %77, %69 : vector<8x128xf32>
    %79 = arith.addf %78, %76 : vector<8x128xf32>
    %cst_31 = arith.constant 1.000000e+00 : f32
    %80 = vector.broadcast %cst_31 : f32 to vector<8x128xf32>
    %81 = arith.cmpf ogt, %79, %80 : vector<8x128xf32>
    %82 = arith.extui %81 : vector<8x128xi1> to vector<8x128xi32>
    %83 = arith.sitofp %82 : vector<8x128xi32> to vector<8x128xf32>
    %cst_32 = arith.constant 1.000000e+00 : f32
    %84 = vector.broadcast %cst_32 : f32 to vector<8x128xf32>
    %85 = arith.mulf %83, %84 : vector<8x128xf32>
    %86 = arith.subf %79, %85 : vector<8x128xf32>
    %87 = arith.addf %70, %83 : vector<8x128xf32>
    %c5_i32 = arith.constant 5 : i32
    %88 = arith.index_cast %c5_i32 : i32 to index
    %c0_33 = arith.constant 0 : index
    %c0_34 = arith.constant 0 : index
    %89 = vector.load %arg1[%88, %c0_33, %c0_34] : memref<8x8x16xf32, #tpu.memory_space<vmem>>, vector<1x8x16xf32>
    %90 = vector.shape_cast %89 : vector<1x8x16xf32> to vector<8x16xf32>
    %cst_35 = arith.constant dense<0.000000e+00> : vector<8x128xf32>
    %91 = tpu.matmul %90, %0, %cst_35 {dimension_numbers = #tpu.dot_dimension_numbers<[1], [0], [0], [1], [0, 0, 1, 1], [], []>} : vector<8x16xf32>, vector<16x128xf32>, vector<8x128xf32> -> vector<8x128xf32>
    %92 = vector.broadcast %1 : vector<1x128xf32> to vector<8x128xf32>
    %93 = arith.addf %91, %92 : vector<8x128xf32>
    %cst_36 = arith.constant 0.899999976 : f32
    %94 = vector.broadcast %cst_36 : f32 to vector<8x128xf32>
    %95 = arith.mulf %94, %86 : vector<8x128xf32>
    %96 = arith.addf %95, %93 : vector<8x128xf32>
    %cst_37 = arith.constant 1.000000e+00 : f32
    %97 = vector.broadcast %cst_37 : f32 to vector<8x128xf32>
    %98 = arith.cmpf ogt, %96, %97 : vector<8x128xf32>
    %99 = arith.extui %98 : vector<8x128xi1> to vector<8x128xi32>
    %100 = arith.sitofp %99 : vector<8x128xi32> to vector<8x128xf32>
    %cst_38 = arith.constant 1.000000e+00 : f32
    %101 = vector.broadcast %cst_38 : f32 to vector<8x128xf32>
    %102 = arith.mulf %100, %101 : vector<8x128xf32>
    %103 = arith.subf %96, %102 : vector<8x128xf32>
    %104 = arith.addf %87, %100 : vector<8x128xf32>
    %c6_i32 = arith.constant 6 : i32
    %105 = arith.index_cast %c6_i32 : i32 to index
    %c0_39 = arith.constant 0 : index
    %c0_40 = arith.constant 0 : index
    %106 = vector.load %arg1[%105, %c0_39, %c0_40] : memref<8x8x16xf32, #tpu.memory_space<vmem>>, vector<1x8x16xf32>
    %107 = vector.shape_cast %106 : vector<1x8x16xf32> to vector<8x16xf32>
    %cst_41 = arith.constant dense<0.000000e+00> : vector<8x128xf32>
    %108 = tpu.matmul %107, %0, %cst_41 {dimension_numbers = #tpu.dot_dimension_numbers<[1], [0], [0], [1], [0, 0, 1, 1], [], []>} : vector<8x16xf32>, vector<16x128xf32>, vector<8x128xf32> -> vector<8x128xf32>
    %109 = vector.broadcast %1 : vector<1x128xf32> to vector<8x128xf32>
    %110 = arith.addf %108, %109 : vector<8x128xf32>
    %cst_42 = arith.constant 0.899999976 : f32
    %111 = vector.broadcast %cst_42 : f32 to vector<8x128xf32>
    %112 = arith.mulf %111, %103 : vector<8x128xf32>
    %113 = arith.addf %112, %110 : vector<8x128xf32>
    %cst_43 = arith.constant 1.000000e+00 : f32
    %114 = vector.broadcast %cst_43 : f32 to vector<8x128xf32>
    %115 = arith.cmpf ogt, %113, %114 : vector<8x128xf32>
    %116 = arith.extui %115 : vector<8x128xi1> to vector<8x128xi32>
    %117 = arith.sitofp %116 : vector<8x128xi32> to vector<8x128xf32>
    %cst_44 = arith.constant 1.000000e+00 : f32
    %118 = vector.broadcast %cst_44 : f32 to vector<8x128xf32>
    %119 = arith.mulf %117, %118 : vector<8x128xf32>
    %120 = arith.subf %113, %119 : vector<8x128xf32>
    %121 = arith.addf %104, %117 : vector<8x128xf32>
    %c7_i32 = arith.constant 7 : i32
    %122 = arith.index_cast %c7_i32 : i32 to index
    %c0_45 = arith.constant 0 : index
    %c0_46 = arith.constant 0 : index
    %123 = vector.load %arg1[%122, %c0_45, %c0_46] : memref<8x8x16xf32, #tpu.memory_space<vmem>>, vector<1x8x16xf32>
    %124 = vector.shape_cast %123 : vector<1x8x16xf32> to vector<8x16xf32>
    %cst_47 = arith.constant dense<0.000000e+00> : vector<8x128xf32>
    %125 = tpu.matmul %124, %0, %cst_47 {dimension_numbers = #tpu.dot_dimension_numbers<[1], [0], [0], [1], [0, 0, 1, 1], [], []>} : vector<8x16xf32>, vector<16x128xf32>, vector<8x128xf32> -> vector<8x128xf32>
    %126 = vector.broadcast %1 : vector<1x128xf32> to vector<8x128xf32>
    %127 = arith.addf %125, %126 : vector<8x128xf32>
    %cst_48 = arith.constant 0.899999976 : f32
    %128 = vector.broadcast %cst_48 : f32 to vector<8x128xf32>
    %129 = arith.mulf %128, %120 : vector<8x128xf32>
    %130 = arith.addf %129, %127 : vector<8x128xf32>
    %cst_49 = arith.constant 1.000000e+00 : f32
    %131 = vector.broadcast %cst_49 : f32 to vector<8x128xf32>
    %132 = arith.cmpf ogt, %130, %131 : vector<8x128xf32>
    %133 = arith.extui %132 : vector<8x128xi1> to vector<8x128xi32>
    %134 = arith.sitofp %133 : vector<8x128xi32> to vector<8x128xf32>
    %cst_50 = arith.constant 1.000000e+00 : f32
    %135 = vector.broadcast %cst_50 : f32 to vector<8x128xf32>
    %136 = arith.mulf %134, %135 : vector<8x128xf32>
    %137 = arith.subf %130, %136 : vector<8x128xf32>
    %138 = arith.addf %121, %134 : vector<8x128xf32>
    %c8_i32 = arith.constant 8 : i32
    %c0_51 = arith.constant 0 : index
    %c0_52 = arith.constant 0 : index
    %139 = vector.load %arg4[%c0_51, %c0_52] : memref<128x128xf32, #tpu.memory_space<vmem>>, vector<128x128xf32>
    %cst_53 = arith.constant dense<0.000000e+00> : vector<8x128xf32>
    %140 = tpu.matmul %138, %139, %cst_53 {dimension_numbers = #tpu.dot_dimension_numbers<[1], [0], [0], [1], [0, 0, 1, 1], [], []>} : vector<8x128xf32>, vector<128x128xf32>, vector<8x128xf32> -> vector<8x128xf32>
    %c0_54 = arith.constant 0 : index
    %c0_55 = arith.constant 0 : index
    %141 = vector.load %arg5[%c0_54, %c0_55] : memref<1x128xf32, #tpu.memory_space<vmem>>, vector<1x128xf32>
    %142 = vector.broadcast %141 : vector<1x128xf32> to vector<8x128xf32>
    %143 = arith.addf %140, %142 : vector<8x128xf32>
    %cst_56 = arith.constant dense<0xFF800000> : vector<8xf32>
    %144 = vector.multi_reduction <maximumf>, %143, %cst_56 [1] : vector<8x128xf32> to vector<8xf32>
    %145 = vector.shape_cast %144 : vector<8xf32> to vector<8x1xf32>
    %146 = vector.broadcast %145 : vector<8x1xf32> to vector<8x128xf32>
    %147 = arith.subf %143, %146 : vector<8x128xf32>
    %148 = math.exp %147 : vector<8x128xf32>
    %cst_57 = arith.constant dense<0.000000e+00> : vector<8xf32>
    %149 = vector.multi_reduction <add>, %148, %cst_57 [1] : vector<8x128xf32> to vector<8xf32>
    %150 = vector.shape_cast %149 : vector<8xf32> to vector<8x1xf32>
    %151 = math.log %150 : vector<8x1xf32>
    %152 = vector.broadcast %151 : vector<8x1xf32> to vector<8x128xf32>
    %153 = arith.subf %147, %152 : vector<8x128xf32>
    %c0_58 = arith.constant 0 : index
    %c0_59 = arith.constant 0 : index
    %154 = vector.load %arg6[%c0_58, %c0_59] : memref<8x128xf32, #tpu.memory_space<vmem>>, vector<8x128xf32>
    tpu.vector_store %arg6[%c0_58, %c0_59], %153 {strides = array<i32>} : memref<8x128xf32, #tpu.memory_space<vmem>>, vector<8x128xf32>,
    return
  }
  func.func @transform_0(%arg0: i32) -> (i32, i32, i32) {
    %c0_i32 = arith.constant 0 : i32
    %c0_i32_0 = arith.constant 0 : i32
    %c0_i32_1 = arith.constant 0 : i32
    return %c0_i32, %arg0, %c0_i32_0 : i32, i32, i32
  }
  func.func @transform_1(%arg0: i32) -> (i32, i32) {
    %c0_i32 = arith.constant 0 : i32
    %c0_i32_0 = arith.constant 0 : i32
    %c0_i32_1 = arith.constant 0 : i32
    return %c0_i32, %c0_i32_0 : i32, i32
  }
  func.func @transform_2(%arg0: i32) -> (i32, i32) {
    %c0_i32 = arith.constant 0 : i32
    %c0_i32_0 = arith.constant 0 : i32
    %c0_i32_1 = arith.constant 0 : i32
    return %c0_i32, %c0_i32_0 : i32, i32
  }
  func.func @transform_3(%arg0: i32) -> (i32, i32) {
    %c0_i32 = arith.constant 0 : i32
    %c0_i32_0 = arith.constant 0 : i32
    %c0_i32_1 = arith.constant 0 : i32
    return %c0_i32, %c0_i32_0 : i32, i32
  }
  func.func @transform_4(%arg0: i32) -> (i32, i32) {
    %c0_i32 = arith.constant 0 : i32
    %c0_i32_0 = arith.constant 0 : i32
    %c0_i32_1 = arith.constant 0 : i32
    return %c0_i32, %c0_i32_0 : i32, i32
  }
  func.func @transform_5(%arg0: i32) -> (i32, i32) {
    %c0_i32 = arith.constant 0 : i32
    %c0_i32_0 = arith.constant 0 : i32
    return %arg0, %c0_i32 : i32, i32
  }
}

module attributes {stable_mosaic.version = 11 : i64} {
  func.func @model_kernel(%arg0: i32, %arg1: memref<8x8x16xf32, #tpu.memory_space<vmem>>, %arg2: memref<16x128xf32, #tpu.memory_space<vmem>>, %arg3: memref<1x128xf32, #tpu.memory_space<vmem>>, %arg4: memref<128x128xf32, #tpu.memory_space<vmem>>, %arg5: memref<1x128xf32, #tpu.memory_space<vmem>>, %arg6: memref<8x128xf32, #tpu.memory_space<vmem>>) attributes {dimension_semantics = [#tpu.dimension_semantics<parallel>], iteration_bounds = array<i64: 1>, scalar_prefetch = 0 : i64, scratch_operands = 0 : i64, tpu.core_type = #tpu.core_type<tc>, window_params = [{transform_indices = @transform_0, window_bounds = array<i64: 8, 8, 16>}, {pipeline_mode = #tpu.pipeline_mode<synchronous>, transform_indices = @transform_1, window_bounds = array<i64: 16, 128>}, {pipeline_mode = #tpu.pipeline_mode<synchronous>, transform_indices = @transform_2, window_bounds = array<i64: 1, 128>}, {pipeline_mode = #tpu.pipeline_mode<synchronous>, transform_indices = @transform_3, window_bounds = array<i64: 128, 128>}, {pipeline_mode = #tpu.pipeline_mode<synchronous>, transform_indices = @transform_4, window_bounds = array<i64: 1, 128>}, {transform_indices = @transform_5, window_bounds = array<i64: 8, 128>}]} {
    %c0 = arith.constant 0 : index
    %c0_0 = arith.constant 0 : index
    %0 = vector.load %arg2[%c0, %c0_0] : memref<16x128xf32, #tpu.memory_space<vmem>>, vector<16x128xf32>
    %c0_1 = arith.constant 0 : index
    %c0_2 = arith.constant 0 : index
    %1 = vector.load %arg3[%c0_1, %c0_2] : memref<1x128xf32, #tpu.memory_space<vmem>>, vector<1x128xf32>
    %cst = arith.constant 0.000000e+00 : f32
    %2 = vector.broadcast %cst : f32 to vector<8x128xf32>
    %c0_i32 = arith.constant 0 : i32
    %3 = arith.index_cast %c0_i32 : i32 to index
    %c0_3 = arith.constant 0 : index
    %c0_4 = arith.constant 0 : index
    %4 = vector.load %arg1[%3, %c0_3, %c0_4] : memref<8x8x16xf32, #tpu.memory_space<vmem>>, vector<1x8x16xf32>
    %5 = vector.shape_cast %4 : vector<1x8x16xf32> to vector<8x16xf32>
    %cst_5 = arith.constant dense<0.000000e+00> : vector<8x128xf32>
    %6 = tpu.matmul %5, %0, %cst_5 {dimension_numbers = #tpu.dot_dimension_numbers<[1], [0], [0], [1], [0, 0, 1, 1], [], []>} : vector<8x16xf32>, vector<16x128xf32>, vector<8x128xf32> -> vector<8x128xf32>
    %7 = vector.broadcast %1 : vector<1x128xf32> to vector<8x128xf32>
    %8 = arith.addf %6, %7 : vector<8x128xf32>
    %cst_6 = arith.constant 0.899999976 : f32
    %9 = vector.broadcast %cst_6 : f32 to vector<8x128xf32>
    %10 = arith.mulf %9, %2 : vector<8x128xf32>
    %11 = arith.addf %10, %8 : vector<8x128xf32>
    %cst_7 = arith.constant 1.000000e+00 : f32
    %12 = vector.broadcast %cst_7 : f32 to vector<8x128xf32>
    %13 = arith.cmpf ogt, %11, %12 : vector<8x128xf32>
    %14 = arith.extui %13 : vector<8x128xi1> to vector<8x128xi32>
    %15 = arith.sitofp %14 : vector<8x128xi32> to vector<8x128xf32>
    %cst_8 = arith.constant 1.000000e+00 : f32
    %16 = vector.broadcast %cst_8 : f32 to vector<8x128xf32>
    %17 = arith.mulf %15, %16 : vector<8x128xf32>
    %18 = arith.subf %11, %17 : vector<8x128xf32>
    %19 = arith.addf %2, %15 : vector<8x128xf32>
    %c1_i32 = arith.constant 1 : i32
    %20 = arith.index_cast %c1_i32 : i32 to index
    %c0_9 = arith.constant 0 : index
    %c0_10 = arith.constant 0 : index
    %21 = vector.load %arg1[%20, %c0_9, %c0_10] : memref<8x8x16xf32, #tpu.memory_space<vmem>>, vector<1x8x16xf32>
    %22 = vector.shape_cast %21 : vector<1x8x16xf32> to vector<8x16xf32>
    %cst_11 = arith.constant dense<0.000000e+00> : vector<8x128xf32>
    %23 = tpu.matmul %22, %0, %cst_11 {dimension_numbers = #tpu.dot_dimension_numbers<[1], [0], [0], [1], [0, 0, 1, 1], [], []>} : vector<8x16xf32>, vector<16x128xf32>, vector<8x128xf32> -> vector<8x128xf32>
    %24 = vector.broadcast %1 : vector<1x128xf32> to vector<8x128xf32>
    %25 = arith.addf %23, %24 : vector<8x128xf32>
    %cst_12 = arith.constant 0.899999976 : f32
    %26 = vector.broadcast %cst_12 : f32 to vector<8x128xf32>
    %27 = arith.mulf %26, %18 : vector<8x128xf32>
    %28 = arith.addf %27, %25 : vector<8x128xf32>
    %cst_13 = arith.constant 1.000000e+00 : f32
    %29 = vector.broadcast %cst_13 : f32 to vector<8x128xf32>
    %30 = arith.cmpf ogt, %28, %29 : vector<8x128xf32>
    %31 = arith.extui %30 : vector<8x128xi1> to vector<8x128xi32>
    %32 = arith.sitofp %31 : vector<8x128xi32> to vector<8x128xf32>
    %cst_14 = arith.constant 1.000000e+00 : f32
    %33 = vector.broadcast %cst_14 : f32 to vector<8x128xf32>
    %34 = arith.mulf %32, %33 : vector<8x128xf32>
    %35 = arith.subf %28, %34 : vector<8x128xf32>
    %36 = arith.addf %19, %32 : vector<8x128xf32>
    %c2_i32 = arith.constant 2 : i32
    %37 = arith.index_cast %c2_i32 : i32 to index
    %c0_15 = arith.constant 0 : index
    %c0_16 = arith.constant 0 : index
    %38 = vector.load %arg1[%37, %c0_15, %c0_16] : memref<8x8x16xf32, #tpu.memory_space<vmem>>, vector<1x8x16xf32>
    %39 = vector.shape_cast %38 : vector<1x8x16xf32> to vector<8x16xf32>
    %cst_17 = arith.constant dense<0.000000e+00> : vector<8x128xf32>
    %40 = tpu.matmul %39, %0, %cst_17 {dimension_numbers = #tpu.dot_dimension_numbers<[1], [0], [0], [1], [0, 0, 1, 1], [], []>} : vector<8x16xf32>, vector<16x128xf32>, vector<8x128xf32> -> vector<8x128xf32>
    %41 = vector.broadcast %1 : vector<1x128xf32> to vector<8x128xf32>
    %42 = arith.addf %40, %41 : vector<8x128xf32>
    %cst_18 = arith.constant 0.899999976 : f32
    %43 = vector.broadcast %cst_18 : f32 to vector<8x128xf32>
    %44 = arith.mulf %43, %35 : vector<8x128xf32>
    %45 = arith.addf %44, %42 : vector<8x128xf32>
    %cst_19 = arith.constant 1.000000e+00 : f32
    %46 = vector.broadcast %cst_19 : f32 to vector<8x128xf32>
    %47 = arith.cmpf ogt, %45, %46 : vector<8x128xf32>
    %48 = arith.extui %47 : vector<8x128xi1> to vector<8x128xi32>
    %49 = arith.sitofp %48 : vector<8x128xi32> to vector<8x128xf32>
    %cst_20 = arith.constant 1.000000e+00 : f32
    %50 = vector.broadcast %cst_20 : f32 to vector<8x128xf32>
    %51 = arith.mulf %49, %50 : vector<8x128xf32>
    %52 = arith.subf %45, %51 : vector<8x128xf32>
    %53 = arith.addf %36, %49 : vector<8x128xf32>
    %c3_i32 = arith.constant 3 : i32
    %54 = arith.index_cast %c3_i32 : i32 to index
    %c0_21 = arith.constant 0 : index
    %c0_22 = arith.constant 0 : index
    %55 = vector.load %arg1[%54, %c0_21, %c0_22] : memref<8x8x16xf32, #tpu.memory_space<vmem>>, vector<1x8x16xf32>
    %56 = vector.shape_cast %55 : vector<1x8x16xf32> to vector<8x16xf32>
    %cst_23 = arith.constant dense<0.000000e+00> : vector<8x128xf32>
    %57 = tpu.matmul %56, %0, %cst_23 {dimension_numbers = #tpu.dot_dimension_numbers<[1], [0], [0], [1], [0, 0, 1, 1], [], []>} : vector<8x16xf32>, vector<16x128xf32>, vector<8x128xf32> -> vector<8x128xf32>
    %58 = vector.broadcast %1 : vector<1x128xf32> to vector<8x128xf32>
    %59 = arith.addf %57, %58 : vector<8x128xf32>
    %cst_24 = arith.constant 0.899999976 : f32
    %60 = vector.broadcast %cst_24 : f32 to vector<8x128xf32>
    %61 = arith.mulf %60, %52 : vector<8x128xf32>
    %62 = arith.addf %61, %59 : vector<8x128xf32>
    %cst_25 = arith.constant 1.000000e+00 : f32
    %63 = vector.broadcast %cst_25 : f32 to vector<8x128xf32>
    %64 = arith.cmpf ogt, %62, %63 : vector<8x128xf32>
    %65 = arith.extui %64 : vector<8x128xi1> to vector<8x128xi32>
    %66 = arith.sitofp %65 : vector<8x128xi32> to vector<8x128xf32>
    %cst_26 = arith.constant 1.000000e+00 : f32
    %67 = vector.broadcast %cst_26 : f32 to vector<8x128xf32>
    %68 = arith.mulf %66, %67 : vector<8x128xf32>
    %69 = arith.subf %62, %68 : vector<8x128xf32>
    %70 = arith.addf %53, %66 : vector<8x128xf32>
    %c4_i32 = arith.constant 4 : i32
    %71 = arith.index_cast %c4_i32 : i32 to index
    %c0_27 = arith.constant 0 : index
    %c0_28 = arith.constant 0 : index
    %72 = vector.load %arg1[%71, %c0_27, %c0_28] : memref<8x8x16xf32, #tpu.memory_space<vmem>>, vector<1x8x16xf32>
    %73 = vector.shape_cast %72 : vector<1x8x16xf32> to vector<8x16xf32>
    %cst_29 = arith.constant dense<0.000000e+00> : vector<8x128xf32>
    %74 = tpu.matmul %73, %0, %cst_29 {dimension_numbers = #tpu.dot_dimension_numbers<[1], [0], [0], [1], [0, 0, 1, 1], [], []>} : vector<8x16xf32>, vector<16x128xf32>, vector<8x128xf32> -> vector<8x128xf32>
    %75 = vector.broadcast %1 : vector<1x128xf32> to vector<8x128xf32>
    %76 = arith.addf %74, %75 : vector<8x128xf32>
    %cst_30 = arith.constant 0.899999976 : f32
    %77 = vector.broadcast %cst_30 : f32 to vector<8x128xf32>
    %78 = arith.mulf %77, %69 : vector<8x128xf32>
    %79 = arith.addf %78, %76 : vector<8x128xf32>
    %cst_31 = arith.constant 1.000000e+00 : f32
    %80 = vector.broadcast %cst_31 : f32 to vector<8x128xf32>
    %81 = arith.cmpf ogt, %79, %80 : vector<8x128xf32>
    %82 = arith.extui %81 : vector<8x128xi1> to vector<8x128xi32>
    %83 = arith.sitofp %82 : vector<8x128xi32> to vector<8x128xf32>
    %cst_32 = arith.constant 1.000000e+00 : f32
    %84 = vector.broadcast %cst_32 : f32 to vector<8x128xf32>
    %85 = arith.mulf %83, %84 : vector<8x128xf32>
    %86 = arith.subf %79, %85 : vector<8x128xf32>
    %87 = arith.addf %70, %83 : vector<8x128xf32>
    %c5_i32 = arith.constant 5 : i32
    %88 = arith.index_cast %c5_i32 : i32 to index
    %c0_33 = arith.constant 0 : index
    %c0_34 = arith.constant 0 : index
    %89 = vector.load %arg1[%88, %c0_33, %c0_34] : memref<8x8x16xf32, #tpu.memory_space<vmem>>, vector<1x8x16xf32>
    %90 = vector.shape_cast %89 : vector<1x8x16xf32> to vector<8x16xf32>
    %cst_35 = arith.constant dense<0.000000e+00> : vector<8x128xf32>
    %91 = tpu.matmul %90, %0, %cst_35 {dimension_numbers = #tpu.dot_dimension_numbers<[1], [0], [0], [1], [0, 0, 1, 1], [], []>} : vector<8x16xf32>, vector<16x128xf32>, vector<8x128xf32> -> vector<8x128xf32>
    %92 = vector.broadcast %1 : vector<1x128xf32> to vector<8x128xf32>
    %93 = arith.addf %91, %92 : vector<8x128xf32>
    %cst_36 = arith.constant 0.899999976 : f32
    %94 = vector.broadcast %cst_36 : f32 to vector<8x128xf32>
    %95 = arith.mulf %94, %86 : vector<8x128xf32>
    %96 = arith.addf %95, %93 : vector<8x128xf32>
    %cst_37 = arith.constant 1.000000e+00 : f32
    %97 = vector.broadcast %cst_37 : f32 to vector<8x128xf32>
    %98 = arith.cmpf ogt, %96, %97 : vector<8x128xf32>
    %99 = arith.extui %98 : vector<8x128xi1> to vector<8x128xi32>
    %100 = arith.sitofp %99 : vector<8x128xi32> to vector<8x128xf32>
    %cst_38 = arith.constant 1.000000e+00 : f32
    %101 = vector.broadcast %cst_38 : f32 to vector<8x128xf32>
    %102 = arith.mulf %100, %101 : vector<8x128xf32>
    %103 = arith.subf %96, %102 : vector<8x128xf32>
    %104 = arith.addf %87, %100 : vector<8x128xf32>
    %c6_i32 = arith.constant 6 : i32
    %105 = arith.index_cast %c6_i32 : i32 to index
    %c0_39 = arith.constant 0 : index
    %c0_40 = arith.constant 0 : index
    %106 = vector.load %arg1[%105, %c0_39, %c0_40] : memref<8x8x16xf32, #tpu.memory_space<vmem>>, vector<1x8x16xf32>
    %107 = vector.shape_cast %106 : vector<1x8x16xf32> to vector<8x16xf32>
    %cst_41 = arith.constant dense<0.000000e+00> : vector<8x128xf32>
    %108 = tpu.matmul %107, %0, %cst_41 {dimension_numbers = #tpu.dot_dimension_numbers<[1], [0], [0], [1], [0, 0, 1, 1], [], []>} : vector<8x16xf32>, vector<16x128xf32>, vector<8x128xf32> -> vector<8x128xf32>
    %109 = vector.broadcast %1 : vector<1x128xf32> to vector<8x128xf32>
    %110 = arith.addf %108, %109 : vector<8x128xf32>
    %cst_42 = arith.constant 0.899999976 : f32
    %111 = vector.broadcast %cst_42 : f32 to vector<8x128xf32>
    %112 = arith.mulf %111, %103 : vector<8x128xf32>
    %113 = arith.addf %112, %110 : vector<8x128xf32>
    %cst_43 = arith.constant 1.000000e+00 : f32
    %114 = vector.broadcast %cst_43 : f32 to vector<8x128xf32>
    %115 = arith.cmpf ogt, %113, %114 : vector<8x128xf32>
    %116 = arith.extui %115 : vector<8x128xi1> to vector<8x128xi32>
    %117 = arith.sitofp %116 : vector<8x128xi32> to vector<8x128xf32>
    %cst_44 = arith.constant 1.000000e+00 : f32
    %118 = vector.broadcast %cst_44 : f32 to vector<8x128xf32>
    %119 = arith.mulf %117, %118 : vector<8x128xf32>
    %120 = arith.subf %113, %119 : vector<8x128xf32>
    %121 = arith.addf %104, %117 : vector<8x128xf32>
    %c7_i32 = arith.constant 7 : i32
    %122 = arith.index_cast %c7_i32 : i32 to index
    %c0_45 = arith.constant 0 : index
    %c0_46 = arith.constant 0 : index
    %123 = vector.load %arg1[%122, %c0_45, %c0_46] : memref<8x8x16xf32, #tpu.memory_space<vmem>>, vector<1x8x16xf32>
    %124 = vector.shape_cast %123 : vector<1x8x16xf32> to vector<8x16xf32>
    %cst_47 = arith.constant dense<0.000000e+00> : vector<8x128xf32>
    %125 = tpu.matmul %124, %0, %cst_47 {dimension_numbers = #tpu.dot_dimension_numbers<[1], [0], [0], [1], [0, 0, 1, 1], [], []>} : vector<8x16xf32>, vector<16x128xf32>, vector<8x128xf32> -> vector<8x128xf32>
    %126 = vector.broadcast %1 : vector<1x128xf32> to vector<8x128xf32>
    %127 = arith.addf %125, %126 : vector<8x128xf32>
    %cst_48 = arith.constant 0.899999976 : f32
    %128 = vector.broadcast %cst_48 : f32 to vector<8x128xf32>
    %129 = arith.mulf %128, %120 : vector<8x128xf32>
    %130 = arith.addf %129, %127 : vector<8x128xf32>
    %cst_49 = arith.constant 1.000000e+00 : f32
    %131 = vector.broadcast %cst_49 : f32 to vector<8x128xf32>
    %132 = arith.cmpf ogt, %130, %131 : vector<8x128xf32>
    %133 = arith.extui %132 : vector<8x128xi1> to vector<8x128xi32>
    %134 = arith.sitofp %133 : vector<8x128xi32> to vector<8x128xf32>
    %cst_50 = arith.constant 1.000000e+00 : f32
    %135 = vector.broadcast %cst_50 : f32 to vector<8x128xf32>
    %136 = arith.mulf %134, %135 : vector<8x128xf32>
    %137 = arith.subf %130, %136 : vector<8x128xf32>
    %138 = arith.addf %121, %134 : vector<8x128xf32>
    %c8_i32 = arith.constant 8 : i32
    %c0_51 = arith.constant 0 : index
    %c0_52 = arith.constant 0 : index
    %139 = vector.load %arg4[%c0_51, %c0_52] : memref<128x128xf32, #tpu.memory_space<vmem>>, vector<128x128xf32>
    %cst_53 = arith.constant dense<0.000000e+00> : vector<8x128xf32>
    %140 = tpu.matmul %138, %139, %cst_53 {dimension_numbers = #tpu.dot_dimension_numbers<[1], [0], [0], [1], [0, 0, 1, 1], [], []>} : vector<8x128xf32>, vector<128x128xf32>, vector<8x128xf32> -> vector<8x128xf32>
    %c0_54 = arith.constant 0 : index
    %c0_55 = arith.constant 0 : index
    %141 = vector.load %arg5[%c0_54, %c0_55] : memref<1x128xf32, #tpu.memory_space<vmem>>, vector<1x128xf32>
    %142 = vector.broadcast %141 : vector<1x128xf32> to vector<8x128xf32>
    %143 = arith.addf %140, %142 : vector<8x128xf32>
    %cst_56 = arith.constant dense<0xFF800000> : vector<8xf32>
    %144 = vector.multi_reduction <maximumf>, %143, %cst_56 [1] : vector<8x128xf32> to vector<8xf32>
    %145 = vector.shape_cast %144 : vector<8xf32> to vector<8x1xf32>
    %146 = vector.broadcast %145 : vector<8x1xf32> to vector<8x128xf32>
    %147 = arith.subf %143, %146 : vector<8x128xf32>
    %148 = math.exp %147 : vector<8x128xf32>
    %cst_57 = arith.constant dense<0.000000e+00> : vector<8xf32>
    %149 = vector.multi_reduction <add>, %148, %cst_57 [1] : vector<8x128xf32> to vector<8xf32>
    %150 = vector.shape_cast %149 : vector<8xf32> to vector<8x1xf32>
    %151 = math.log %150 : vector<8x1xf32>
    %152 = vector.broadcast %151 : vector<8x1xf32> to vector<8x128xf32>
    %153 = arith.subf %147, %152 : vector<8x128xf32>
    %c0_58 = arith.constant 0 : index
    %c0_59 = arith.constant 0 : index
    %154 = vector.load %arg6[%c0_58, %c0_59] : memref<8x128xf32, #tpu.memory_space<vmem>>, vector<8x128xf32>
    tpu.vector_store %arg6[%c0_58, %c0_59], %153 {strides = array<i32>} : memref<8x128xf32, #tpu.memory_space<vmem>>, vector<8x128xf32>,
    return
  }
  func.func @transform_0(%arg0: i32) -> (i32, i32, i32) {
    %c0_i32 = arith.constant 0 : i32
    %c0_i32_0 = arith.constant 0 : i32
    %c0_i32_1 = arith.constant 0 : i32
    return %c0_i32, %arg0, %c0_i32_0 : i32, i32, i32
  }
  func.func @transform_1(%arg0: i32) -> (i32, i32) {
    %c0_i32 = arith.constant 0 : i32
    %c0_i32_0 = arith.constant 0 : i32
    %c0_i32_1 = arith.constant 0 : i32
    return %c0_i32, %c0_i32_0 : i32, i32
  }
  func.func @transform_2(%arg0: i32) -> (i32, i32) {
    %c0_i32 = arith.constant 0 : i32
    %c0_i32_0 = arith.constant 0 : i32
    %c0_i32_1 = arith.constant 0 : i32
    return %c0_i32, %c0_i32_0 : i32, i32
  }
  func.func @transform_3(%arg0: i32) -> (i32, i32) {
    %c0_i32 = arith.constant 0 : i32
    %c0_i32_0 = arith.constant 0 : i32
    %c0_i32_1 = arith.constant 0 : i32
    return %c0_i32, %c0_i32_0 : i32, i32
  }
  func.func @transform_4(%arg0: i32) -> (i32, i32) {
    %c0_i32 = arith.constant 0 : i32
    %c0_i32_0 = arith.constant 0 : i32
    %c0_i32_1 = arith.constant 0 : i32
    return %c0_i32, %c0_i32_0 : i32, i32
  }
  func.func @transform_5(%arg0: i32) -> (i32, i32) {
    %c0_i32 = arith.constant 0 : i32
    %c0_i32_0 = arith.constant 0 : i32
    return %arg0, %c0_i32 : i32, i32
  }
}

</mosaic_0001>

<llo_original>
// kernel: tpu_custom_call.1
$region0: #{tpu_custom_call.1}
  #allocation0 [shape = 'u32[]', space=smem, size = 0x4, offset = 0x4, fixed_abs, tag = 'smem constant byte address 0x4 - core index']
  #allocation1 [shape = 'u32[144,128]{1,0:T(1,128)}', space=vmem, size = 0x12000, scoped, tag = 'internal scratch']
  %s0 = inlined_call_operand.hbm [shape: f32[8,8,16], index: 0, kind: input, shape index: {}]
  %s1 = inlined_call_operand.hbm [shape: f32[16,128], index: 1, kind: input, shape index: {}]
  %s2 = inlined_call_operand.vmem [shape: f32[1,128], index: 2, kind: input, shape index: {}]
  %s3 = inlined_call_operand.hbm [shape: f32[128,128], index: 3, kind: input, shape index: {}]
  %s4 = inlined_call_operand.vmem [shape: f32[1,128], index: 4, kind: input, shape index: {}]
  %s5 = inlined_call_operand.hbm [shape: f32[8,128], index: 5, kind: output, shape index: {}]
  %s6 = sld [smem:[#allocation0]]
  $region42: #{tpu_custom_call.1} parent=0
    _
  %s8 = ssub.s32 1, %s6
  %s9 = scalar_select 0, %s8, %s6
  $region1: #{tpu_custom_call.1} parent=0
    #allocation2 [shape = 'u8[32768]{0}', space=vmem, size = 0x8000, scoped, tag = 'input window, operand 0, single buffered']
    #allocation3 [shape = 's32[1]{0}', space=sflag, size = 0x4, scoped, tag = 'scoped memory for tpu_custom_call.1']
    #allocation4 [shape = 's32[1]{0}', space=sflag, size = 0x4, scoped, tag = 'scoped memory for tpu_custom_call.1']
    #allocation5 [shape = 'u8[8192]{0}', space=vmem, size = 0x2000, scoped, tag = 'input window, operand 1, single buffered']
    #allocation6 [shape = 's32[1]{0}', space=sflag, size = 0x4, scoped, tag = 'scoped memory for tpu_custom_call.1']
    #allocation7 [shape = 'u8[65536]{0}', space=vmem, size = 0x10000, scoped, tag = 'input window, operand 3, single buffered']
    #allocation8 [shape = 'u8[4096]{0}', space=vmem, size = 0x1000, scoped, tag = 'output window, operand 0, single buffered']
    %10 = vsyncpa [#allocation3], 0
    %11 = vsyncpa [#allocation6], 0
    %12 = vsyncpa [#allocation4], 0
    // Predicated region
    $region2: #{tpu_custom_call.1} parent=1 // pred_check
      _
    $region3: #{tpu_custom_call.1} parent=1 // pred_check_branch
      %14 = sbr.rel (0) target = $region5
    $region4: #{tpu_custom_call.1} parent=1 // pred_region
      %s16 = ssub.s32 1024, 1024
      %17 = vsyncadd [#allocation3], %s16
      %s18 = sshll.u32 [#allocation2], 4
      %s19 = int_to_ptr.vmem [resolvable:$true] %s18
      %24 = dma.hbm_to_vmem [thread:$0]  %s0, 1024, %s19, [#allocation3], 128, 128, 8
    $region5: #{tpu_custom_call.1} parent=1 // pred_fallthru
      _
    // Predicated region
    $region6: #{tpu_custom_call.1} parent=1 // pred_check
      _
    $region7: #{tpu_custom_call.1} parent=1 // pred_check_branch
      %26 = sbr.rel (0) target = $region9
    $region8: #{tpu_custom_call.1} parent=1 // pred_region
      %s28 = ssub.s32 256, 256
      %29 = vsyncadd [#allocation6], %s28
      %s30 = sshll.u32 [#allocation5], 4
      %s31 = int_to_ptr.vmem [resolvable:$true] %s30
      %36 = dma.hbm_to_vmem [thread:$0]  %s1, 256, %s31, [#allocation6], 128, 128, 8
    $region9: #{tpu_custom_call.1} parent=1 // pred_fallthru
      _
    // Predicated region
    $region10: #{tpu_custom_call.1} parent=1 // pred_check
      _
    $region11: #{tpu_custom_call.1} parent=1 // pred_check_branch
      %38 = sbr.rel (0) target = $region13
    $region12: #{tpu_custom_call.1} parent=1 // pred_region
      _
    $region13: #{tpu_custom_call.1} parent=1 // pred_fallthru
      _
    // Predicated region
    $region14: #{tpu_custom_call.1} parent=1 // pred_check
      _
    $region15: #{tpu_custom_call.1} parent=1 // pred_check_branch
      %40 = sbr.rel (0) target = $region17
    $region16: #{tpu_custom_call.1} parent=1 // pred_region
      %s42 = ssub.s32 2048, 2048
      %43 = vsyncadd [#allocation6], %s42
      %s44 = sshll.u32 [#allocation7], 4
      %s45 = int_to_ptr.vmem [resolvable:$true] %s44
      %50 = dma.hbm_to_vmem [thread:$0]  %s3, 2048, %s45, [#allocation6], 128, 128, 8
    $region17: #{tpu_custom_call.1} parent=1 // pred_fallthru
      _
    // Predicated region
    $region18: #{tpu_custom_call.1} parent=1 // pred_check
      _
    $region19: #{tpu_custom_call.1} parent=1 // pred_check_branch
      %52 = sbr.rel (0) target = $region21
    $region20: #{tpu_custom_call.1} parent=1 // pred_region
      _
    $region21: #{tpu_custom_call.1} parent=1 // pred_fallthru
      _
    // Predicated region
    $region22: #{tpu_custom_call.1} parent=1 // pred_check
      _
    $region23: #{tpu_custom_call.1} parent=1 // pred_check_branch
      %54 = sbr.rel (0) target = $region25
    $region24: #{tpu_custom_call.1} parent=1 // pred_region
      %55 = dma.done [#allocation3], 1024
    $region25: #{tpu_custom_call.1} parent=1 // pred_fallthru
      _
    // Predicated region
    $region26: #{tpu_custom_call.1} parent=1 // pred_check
      _
    $region27: #{tpu_custom_call.1} parent=1 // pred_check_branch
      %57 = sbr.rel (0) target = $region29
    $region28: #{tpu_custom_call.1} parent=1 // pred_region
      %58 = dma.done [#allocation6], 256
    $region29: #{tpu_custom_call.1} parent=1 // pred_fallthru
      _
    // Predicated region
    $region30: #{tpu_custom_call.1} parent=1 // pred_check
      _
    $region31: #{tpu_custom_call.1} parent=1 // pred_check_branch
      %60 = sbr.rel (0) target = $region33
    $region32: #{tpu_custom_call.1} parent=1 // pred_region
      %61 = dma.done [#allocation6], 2048
    $region33: #{tpu_custom_call.1} parent=1 // pred_fallthru
      _
    %v62 = vld [vmem:[#allocation5] sm:$0xff]
    %v63 = vld [vmem:[#allocation5 + $0x8] sm:$0xff]
    %v64 = vld [vmem:[%s2] sm:$0x1]
    %v65 = vld [vmem:[#allocation2] sm:$0xff]
    %v67 = vlaneseq
    %v68 = vshrl.u32 %v67, 7
    %v69 = vsub.s32 0, %v68
    %v70 = vrot.slane %v64, %v69
    %vm72 = vcmask 130048
    %v74 = vsel %vm72, %v65, 0
    %76 = vmatprep.subr.mxu0 0.0
    %77 = vmatpush1.msra.mxu0 %v62
    %78 = vmatprep.subr.mxu0 0.0
    %79 = vmatpush1.msra.mxu0 %v63
    %80 = vmatprep.subr.mxu0 0.0
    %81 = vmatpush1.msra.mxu0 0.0
    %82 = vmatprep.subr.mxu0 0.0
    %83 = vmatpush1.msra.mxu0 0.0
    %84 = vmatprep.subr.mxu0 0.0
    %85 = vmatpush1.msra.mxu0 0.0
    %86 = vmatprep.subr.mxu0 0.0
    %87 = vmatpush1.msra.mxu0 0.0
    %88 = vmatprep.subr.mxu0 0.0
    %89 = vmatpush1.msra.mxu0 0.0
    %90 = vmatprep.subr.mxu0 0.0
    %91 = vmatpush1.msra.mxu0 0.0
    %92 = vmatprep.subr.mxu0 0.0
    %93 = vmatpush1.msra.mxu0 0.0
    %94 = vmatprep.subr.mxu0 0.0
    %95 = vmatpush1.msra.mxu0 0.0
    %96 = vmatprep.subr.mxu0 0.0
    %97 = vmatpush1.msra.mxu0 0.0
    %98 = vmatprep.subr.mxu0 0.0
    %99 = vmatpush1.msra.mxu0 0.0
    %100 = vmatprep.subr.mxu0 0.0
    %101 = vmatpush1.msra.mxu0 0.0
    %102 = vmatprep.subr.mxu0 0.0
    %103 = vmatpush1.msra.mxu0 0.0
    %104 = vmatprep.subr.mxu0 0.0
    %105 = vmatpush1.msra.mxu0 0.0
    %106 = vmatprep.subr.mxu0 0.0
    %107 = vmatpush1.msra.mxu0 0.0
    %108 = vmatprep.subr.mxu0 0.0
    %109 = vmatpush1.msra.mxu0 0.0
    %110 = vmatprep.subr.mxu0 0.0
    %111 = vmatpush1.msra.mxu0 0.0
    %112 = vmatprep.subr.mxu0 0.0
    %113 = vmatpush1.msra.mxu0 0.0
    %114 = vmatprep.subr.mxu0 0.0
    %115 = vmatpush1.msra.mxu0 0.0
    %116 = vmatprep.subr.mxu0 0.0
    %117 = vmatpush1.msra.mxu0 0.0
    %118 = vmatprep.subr.mxu0 0.0
    %119 = vmatpush1.msra.mxu0 0.0
    %120 = vmatprep.subr.mxu0 0.0
    %121 = vmatpush1.msra.mxu0 0.0
    %122 = vmatprep.subr.mxu0 0.0
    %123 = vmatpush1.msra.mxu0 0.0
    %124 = vmatprep.subr.mxu0 0.0
    %125 = vmatpush1.msra.mxu0 0.0
    %126 = vmatprep.subr.mxu0 0.0
    %127 = vmatpush1.msra.mxu0 0.0
    %128 = vmatprep.subr.mxu0 0.0
    %129 = vmatpush1.msra.mxu0 0.0
    %130 = vmatprep.subr.mxu0 0.0
    %131 = vmatpush1.msra.mxu0 0.0
    %132 = vmatprep.subr.mxu0 0.0
    %133 = vmatpush1.msra.mxu0 0.0
    %134 = vmatprep.subr.mxu0 0.0
    %135 = vmatpush1.msra.mxu0 0.0
    %136 = vmatprep.subr.mxu0 0.0
    %137 = vmatpush1.msra.mxu0 0.0
    %138 = vmatprep.subr.mxu0 0.0
    %139 = vmatpush1.msra.mxu0 0.0
    %140 = vmatprep.mubr.f32.mxu0 0.0
    %141 = vmatmul.mubr.f32.gmra.mrb[0].mxu0 %v74
    %v142 = vpop.f32.mrb[0].mxu0
    %v143 = vadd.f32 %v70, %v142
    %v144 = vpop.f32.mrb[0].mxu0
    %145 = vdwg.mxu0
    %v146 = vadd.f32 %v143, 0.0
    %vm147 = vcmp.gt.f32.partialorder %v146, 1.0
    %v148 = vsel %vm147, 1, 0
    %v149 = vcvt.s32.f32 %v148
    %v150 = vsub.f32 %v146, %v149
    %v151 = vadd.f32 %v149, 0.0
    %s152 = scalar_lea.vmem [#allocation2], 8
    %v153 = vld [vmem:[%s152] sm:$0xff]
    %v155 = vsel %vm72, %v153, 0
    %157 = vmatprep.subr.mxu0 0.0
    %158 = vmatpush1.msra.mxu0 %v62
    %159 = vmatprep.subr.mxu0 0.0
    %160 = vmatpush1.msra.mxu0 %v63
    %161 = vmatprep.subr.mxu0 0.0
    %162 = vmatpush1.msra.mxu0 0.0
    %163 = vmatprep.subr.mxu0 0.0
    %164 = vmatpush1.msra.mxu0 0.0
    %165 = vmatprep.subr.mxu0 0.0
    %166 = vmatpush1.msra.mxu0 0.0
    %167 = vmatprep.subr.mxu0 0.0
    %168 = vmatpush1.msra.mxu0 0.0
    %169 = vmatprep.subr.mxu0 0.0
    %170 = vmatpush1.msra.mxu0 0.0
    %171 = vmatprep.subr.mxu0 0.0
    %172 = vmatpush1.msra.mxu0 0.0
    %173 = vmatprep.subr.mxu0 0.0
    %174 = vmatpush1.msra.mxu0 0.0
    %175 = vmatprep.subr.mxu0 0.0
    %176 = vmatpush1.msra.mxu0 0.0
    %177 = vmatprep.subr.mxu0 0.0
    %178 = vmatpush1.msra.mxu0 0.0
    %179 = vmatprep.subr.mxu0 0.0
    %180 = vmatpush1.msra.mxu0 0.0
    %181 = vmatprep.subr.mxu0 0.0
    %182 = vmatpush1.msra.mxu0 0.0
    %183 = vmatprep.subr.mxu0 0.0
    %184 = vmatpush1.msra.mxu0 0.0
    %185 = vmatprep.subr.mxu0 0.0
    %186 = vmatpush1.msra.mxu0 0.0
    %187 = vmatprep.subr.mxu0 0.0
    %188 = vmatpush1.msra.mxu0 0.0
    %189 = vmatprep.subr.mxu0 0.0
    %190 = vmatpush1.msra.mxu0 0.0
    %191 = vmatprep.subr.mxu0 0.0
    %192 = vmatpush1.msra.mxu0 0.0
    %193 = vmatprep.subr.mxu0 0.0
    %194 = vmatpush1.msra.mxu0 0.0
    %195 = vmatprep.subr.mxu0 0.0
    %196 = vmatpush1.msra.mxu0 0.0
    %197 = vmatprep.subr.mxu0 0.0
    %198 = vmatpush1.msra.mxu0 0.0
    %199 = vmatprep.subr.mxu0 0.0
    %200 = vmatpush1.msra.mxu0 0.0
    %201 = vmatprep.subr.mxu0 0.0
    %202 = vmatpush1.msra.mxu0 0.0
    %203 = vmatprep.subr.mxu0 0.0
    %204 = vmatpush1.msra.mxu0 0.0
    %205 = vmatprep.subr.mxu0 0.0
    %206 = vmatpush1.msra.mxu0 0.0
    %207 = vmatprep.subr.mxu0 0.0
    %208 = vmatpush1.msra.mxu0 0.0
    %209 = vmatprep.subr.mxu0 0.0
    %210 = vmatpush1.msra.mxu0 0.0
    %211 = vmatprep.subr.mxu0 0.0
    %212 = vmatpush1.msra.mxu0 0.0
    %213 = vmatprep.subr.mxu0 0.0
    %214 = vmatpush1.msra.mxu0 0.0
    %215 = vmatprep.subr.mxu0 0.0
    %216 = vmatpush1.msra.mxu0 0.0
    %217 = vmatprep.subr.mxu0 0.0
    %218 = vmatpush1.msra.mxu0 0.0
    %219 = vmatprep.subr.mxu0 0.0
    %220 = vmatpush1.msra.mxu0 0.0
    %221 = vmatprep.mubr.f32.mxu0 0.0
    %222 = vmatmul.mubr.f32.gmra.mrb[0].mxu0 %v155
    %v223 = vpop.f32.mrb[0].mxu0
    %v224 = vadd.f32 %v70, %v223
    %v225 = vpop.f32.mrb[0].mxu0
    %226 = vdwg.mxu0
    %v227 = vmul.f32 %v150, 0.9
    %v228 = vadd.f32 %v227, %v224
    %vm229 = vcmp.gt.f32.partialorder %v228, 1.0
    %v230 = vsel %vm229, 1, 0
    %v231 = vcvt.s32.f32 %v230
    %v232 = vsub.f32 %v228, %v231
    %v233 = vadd.f32 %v151, %v231
    %s234 = scalar_lea.vmem [#allocation2], 16
    %v235 = vld [vmem:[%s234] sm:$0xff]
    %v237 = vsel %vm72, %v235, 0
    %239 = vmatprep.subr.mxu0 0.0
    %240 = vmatpush1.msra.mxu0 %v62
    %241 = vmatprep.subr.mxu0 0.0
    %242 = vmatpush1.msra.mxu0 %v63
    %243 = vmatprep.subr.mxu0 0.0
    %244 = vmatpush1.msra.mxu0 0.0
    %245 = vmatprep.subr.mxu0 0.0
    %246 = vmatpush1.msra.mxu0 0.0
    %247 = vmatprep.subr.mxu0 0.0
    %248 = vmatpush1.msra.mxu0 0.0
    %249 = vmatprep.subr.mxu0 0.0
    %250 = vmatpush1.msra.mxu0 0.0
    %251 = vmatprep.subr.mxu0 0.0
    %252 = vmatpush1.msra.mxu0 0.0
    %253 = vmatprep.subr.mxu0 0.0
    %254 = vmatpush1.msra.mxu0 0.0
    %255 = vmatprep.subr.mxu0 0.0
    %256 = vmatpush1.msra.mxu0 0.0
    %257 = vmatprep.subr.mxu0 0.0
    %258 = vmatpush1.msra.mxu0 0.0
    %259 = vmatprep.subr.mxu0 0.0
    %260 = vmatpush1.msra.mxu0 0.0
    %261 = vmatprep.subr.mxu0 0.0
    %262 = vmatpush1.msra.mxu0 0.0
    %263 = vmatprep.subr.mxu0 0.0
    %264 = vmatpush1.msra.mxu0 0.0
    %265 = vmatprep.subr.mxu0 0.0
    %266 = vmatpush1.msra.mxu0 0.0
    %267 = vmatprep.subr.mxu0 0.0
    %268 = vmatpush1.msra.mxu0 0.0
    %269 = vmatprep.subr.mxu0 0.0
    %270 = vmatpush1.msra.mxu0 0.0
    %271 = vmatprep.subr.mxu0 0.0
    %272 = vmatpush1.msra.mxu0 0.0
    %273 = vmatprep.subr.mxu0 0.0
    %274 = vmatpush1.msra.mxu0 0.0
    %275 = vmatprep.subr.mxu0 0.0
    %276 = vmatpush1.msra.mxu0 0.0
    %277 = vmatprep.subr.mxu0 0.0
    %278 = vmatpush1.msra.mxu0 0.0
    %279 = vmatprep.subr.mxu0 0.0
    %280 = vmatpush1.msra.mxu0 0.0
    %281 = vmatprep.subr.mxu0 0.0
    %282 = vmatpush1.msra.mxu0 0.0
    %283 = vmatprep.subr.mxu0 0.0
    %284 = vmatpush1.msra.mxu0 0.0
    %285 = vmatprep.subr.mxu0 0.0
    %286 = vmatpush1.msra.mxu0 0.0
    %287 = vmatprep.subr.mxu0 0.0
    %288 = vmatpush1.msra.mxu0 0.0
    %289 = vmatprep.subr.mxu0 0.0
    %290 = vmatpush1.msra.mxu0 0.0
    %291 = vmatprep.subr.mxu0 0.0
    %292 = vmatpush1.msra.mxu0 0.0
    %293 = vmatprep.subr.mxu0 0.0
    %294 = vmatpush1.msra.mxu0 0.0
    %295 = vmatprep.subr.mxu0 0.0
    %296 = vmatpush1.msra.mxu0 0.0
    %297 = vmatprep.subr.mxu0 0.0
    %298 = vmatpush1.msra.mxu0 0.0
    %299 = vmatprep.subr.mxu0 0.0
    %300 = vmatpush1.msra.mxu0 0.0
    %301 = vmatprep.subr.mxu0 0.0
    %302 = vmatpush1.msra.mxu0 0.0
    %303 = vmatprep.mubr.f32.mxu0 0.0
    %304 = vmatmul.mubr.f32.gmra.mrb[0].mxu0 %v237
    %v305 = vpop.f32.mrb[0].mxu0
    %v306 = vadd.f32 %v70, %v305
    %v307 = vpop.f32.mrb[0].mxu0
    %308 = vdwg.mxu0
    %v309 = vmul.f32 %v232, 0.9
    %v310 = vadd.f32 %v309, %v306
    %vm311 = vcmp.gt.f32.partialorder %v310, 1.0
    %v312 = vsel %vm311, 1, 0
    %v313 = vcvt.s32.f32 %v312
    %v314 = vsub.f32 %v310, %v313
    %v315 = vadd.f32 %v233, %v313
    %s316 = scalar_lea.vmem [#allocation2], 24
    %v317 = vld [vmem:[%s316] sm:$0xff]
    %v319 = vsel %vm72, %v317, 0
    %321 = vmatprep.subr.mxu0 0.0
    %322 = vmatpush1.msra.mxu0 %v62
    %323 = vmatprep.subr.mxu0 0.0
    %324 = vmatpush1.msra.mxu0 %v63
    %325 = vmatprep.subr.mxu0 0.0
    %326 = vmatpush1.msra.mxu0 0.0
    %327 = vmatprep.subr.mxu0 0.0
    %328 = vmatpush1.msra.mxu0 0.0
    %329 = vmatprep.subr.mxu0 0.0
    %330 = vmatpush1.msra.mxu0 0.0
    %331 = vmatprep.subr.mxu0 0.0
    %332 = vmatpush1.msra.mxu0 0.0
    %333 = vmatprep.subr.mxu0 0.0
    %334 = vmatpush1.msra.mxu0 0.0
    %335 = vmatprep.subr.mxu0 0.0
    %336 = vmatpush1.msra.mxu0 0.0
    %337 = vmatprep.subr.mxu0 0.0
    %338 = vmatpush1.msra.mxu0 0.0
    %339 = vmatprep.subr.mxu0 0.0
    %340 = vmatpush1.msra.mxu0 0.0
    %341 = vmatprep.subr.mxu0 0.0
    %342 = vmatpush1.msra.mxu0 0.0
    %343 = vmatprep.subr.mxu0 0.0
    %344 = vmatpush1.msra.mxu0 0.0
    %345 = vmatprep.subr.mxu0 0.0
    %346 = vmatpush1.msra.mxu0 0.0
    %347 = vmatprep.subr.mxu0 0.0
    %348 = vmatpush1.msra.mxu0 0.0
    %349 = vmatprep.subr.mxu0 0.0
    %350 = vmatpush1.msra.mxu0 0.0
    %351 = vmatprep.subr.mxu0 0.0
    %352 = vmatpush1.msra.mxu0 0.0
    %353 = vmatprep.subr.mxu0 0.0
    %354 = vmatpush1.msra.mxu0 0.0
    %355 = vmatprep.subr.mxu0 0.0
    %356 = vmatpush1.msra.mxu0 0.0
    %357 = vmatprep.subr.mxu0 0.0
    %358 = vmatpush1.msra.mxu0 0.0
    %359 = vmatprep.subr.mxu0 0.0
    %360 = vmatpush1.msra.mxu0 0.0
    %361 = vmatprep.subr.mxu0 0.0
    %362 = vmatpush1.msra.mxu0 0.0
    %363 = vmatprep.subr.mxu0 0.0
    %364 = vmatpush1.msra.mxu0 0.0
    %365 = vmatprep.subr.mxu0 0.0
    %366 = vmatpush1.msra.mxu0 0.0
    %367 = vmatprep.subr.mxu0 0.0
    %368 = vmatpush1.msra.mxu0 0.0
    %369 = vmatprep.subr.mxu0 0.0
    %370 = vmatpush1.msra.mxu0 0.0
    %371 = vmatprep.subr.mxu0 0.0
    %372 = vmatpush1.msra.mxu0 0.0
    %373 = vmatprep.subr.mxu0 0.0
    %374 = vmatpush1.msra.mxu0 0.0
    %375 = vmatprep.subr.mxu0 0.0
    %376 = vmatpush1.msra.mxu0 0.0
    %377 = vmatprep.subr.mxu0 0.0
    %378 = vmatpush1.msra.mxu0 0.0
    %379 = vmatprep.subr.mxu0 0.0
    %380 = vmatpush1.msra.mxu0 0.0
    %381 = vmatprep.subr.mxu0 0.0
    %382 = vmatpush1.msra.mxu0 0.0
    %383 = vmatprep.subr.mxu0 0.0
    %384 = vmatpush1.msra.mxu0 0.0
    %385 = vmatprep.mubr.f32.mxu0 0.0
    %386 = vmatmul.mubr.f32.gmra.mrb[0].mxu0 %v319
    %v387 = vpop.f32.mrb[0].mxu0
    %v388 = vadd.f32 %v70, %v387
    %v389 = vpop.f32.mrb[0].mxu0
    %390 = vdwg.mxu0
    %v391 = vmul.f32 %v314, 0.9
    %v392 = vadd.f32 %v391, %v388
    %vm393 = vcmp.gt.f32.partialorder %v392, 1.0
    %v394 = vsel %vm393, 1, 0
    %v395 = vcvt.s32.f32 %v394
    %v396 = vsub.f32 %v392, %v395
    %v397 = vadd.f32 %v315, %v395
    %s398 = scalar_lea.vmem [#allocation2], 32
    %v399 = vld [vmem:[%s398] sm:$0xff]
    %v401 = vsel %vm72, %v399, 0
    %403 = vmatprep.subr.mxu0 0.0
    %404 = vmatpush1.msra.mxu0 %v62
    %405 = vmatprep.subr.mxu0 0.0
    %406 = vmatpush1.msra.mxu0 %v63
    %407 = vmatprep.subr.mxu0 0.0
    %408 = vmatpush1.msra.mxu0 0.0
    %409 = vmatprep.subr.mxu0 0.0
    %410 = vmatpush1.msra.mxu0 0.0
    %411 = vmatprep.subr.mxu0 0.0
    %412 = vmatpush1.msra.mxu0 0.0
    %413 = vmatprep.subr.mxu0 0.0
    %414 = vmatpush1.msra.mxu0 0.0
    %415 = vmatprep.subr.mxu0 0.0
    %416 = vmatpush1.msra.mxu0 0.0
    %417 = vmatprep.subr.mxu0 0.0
    %418 = vmatpush1.msra.mxu0 0.0
    %419 = vmatprep.subr.mxu0 0.0
    %420 = vmatpush1.msra.mxu0 0.0
    %421 = vmatprep.subr.mxu0 0.0
    %422 = vmatpush1.msra.mxu0 0.0
    %423 = vmatprep.subr.mxu0 0.0
    %424 = vmatpush1.msra.mxu0 0.0
    %425 = vmatprep.subr.mxu0 0.0
    %426 = vmatpush1.msra.mxu0 0.0
    %427 = vmatprep.subr.mxu0 0.0
    %428 = vmatpush1.msra.mxu0 0.0
    %429 = vmatprep.subr.mxu0 0.0
    %430 = vmatpush1.msra.mxu0 0.0
    %431 = vmatprep.subr.mxu0 0.0
    %432 = vmatpush1.msra.mxu0 0.0
    %433 = vmatprep.subr.mxu0 0.0
    %434 = vmatpush1.msra.mxu0 0.0
    %435 = vmatprep.subr.mxu0 0.0
    %436 = vmatpush1.msra.mxu0 0.0
    %437 = vmatprep.subr.mxu0 0.0
    %438 = vmatpush1.msra.mxu0 0.0
    %439 = vmatprep.subr.mxu0 0.0
    %440 = vmatpush1.msra.mxu0 0.0
    %441 = vmatprep.subr.mxu0 0.0
    %442 = vmatpush1.msra.mxu0 0.0
    %443 = vmatprep.subr.mxu0 0.0
    %444 = vmatpush1.msra.mxu0 0.0
    %445 = vmatprep.subr.mxu0 0.0
    %446 = vmatpush1.msra.mxu0 0.0
    %447 = vmatprep.subr.mxu0 0.0
    %448 = vmatpush1.msra.mxu0 0.0
    %449 = vmatprep.subr.mxu0 0.0
    %450 = vmatpush1.msra.mxu0 0.0
    %451 = vmatprep.subr.mxu0 0.0
    %452 = vmatpush1.msra.mxu0 0.0
    %453 = vmatprep.subr.mxu0 0.0
    %454 = vmatpush1.msra.mxu0 0.0
    %455 = vmatprep.subr.mxu0 0.0
    %456 = vmatpush1.msra.mxu0 0.0
    %457 = vmatprep.subr.mxu0 0.0
    %458 = vmatpush1.msra.mxu0 0.0
    %459 = vmatprep.subr.mxu0 0.0
    %460 = vmatpush1.msra.mxu0 0.0
    %461 = vmatprep.subr.mxu0 0.0
    %462 = vmatpush1.msra.mxu0 0.0
    %463 = vmatprep.subr.mxu0 0.0
    %464 = vmatpush1.msra.mxu0 0.0
    %465 = vmatprep.subr.mxu0 0.0
    %466 = vmatpush1.msra.mxu0 0.0
    %467 = vmatprep.mubr.f32.mxu0 0.0
    %468 = vmatmul.mubr.f32.gmra.mrb[0].mxu0 %v401
    %v469 = vpop.f32.mrb[0].mxu0
    %v470 = vadd.f32 %v70, %v469
    %v471 = vpop.f32.mrb[0].mxu0
    %472 = vdwg.mxu0
    %v473 = vmul.f32 %v396, 0.9
    %v474 = vadd.f32 %v473, %v470
    %vm475 = vcmp.gt.f32.partialorder %v474, 1.0
    %v476 = vsel %vm475, 1, 0
    %v477 = vcvt.s32.f32 %v476
    %v478 = vsub.f32 %v474, %v477
    %v479 = vadd.f32 %v397, %v477
    %s480 = scalar_lea.vmem [#allocation2], 40
    %v481 = vld [vmem:[%s480] sm:$0xff]
    %v483 = vsel %vm72, %v481, 0
    %485 = vmatprep.subr.mxu0 0.0
    %486 = vmatpush1.msra.mxu0 %v62
    %487 = vmatprep.subr.mxu0 0.0
    %488 = vmatpush1.msra.mxu0 %v63
    %489 = vmatprep.subr.mxu0 0.0
    %490 = vmatpush1.msra.mxu0 0.0
    %491 = vmatprep.subr.mxu0 0.0
    %492 = vmatpush1.msra.mxu0 0.0
    %493 = vmatprep.subr.mxu0 0.0
    %494 = vmatpush1.msra.mxu0 0.0
    %495 = vmatprep.subr.mxu0 0.0
    %496 = vmatpush1.msra.mxu0 0.0
    %497 = vmatprep.subr.mxu0 0.0
    %498 = vmatpush1.msra.mxu0 0.0
    %499 = vmatprep.subr.mxu0 0.0
    %500 = vmatpush1.msra.mxu0 0.0
    %501 = vmatprep.subr.mxu0 0.0
    %502 = vmatpush1.msra.mxu0 0.0
    %503 = vmatprep.subr.mxu0 0.0
    %504 = vmatpush1.msra.mxu0 0.0
    %505 = vmatprep.subr.mxu0 0.0
    %506 = vmatpush1.msra.mxu0 0.0
    %507 = vmatprep.subr.mxu0 0.0
    %508 = vmatpush1.msra.mxu0 0.0
    %509 = vmatprep.subr.mxu0 0.0
    %510 = vmatpush1.msra.mxu0 0.0
    %511 = vmatprep.subr.mxu0 0.0
    %512 = vmatpush1.msra.mxu0 0.0
    %513 = vmatprep.subr.mxu0 0.0
    %514 = vmatpush1.msra.mxu0 0.0
    %515 = vmatprep.subr.mxu0 0.0
    %516 = vmatpush1.msra.mxu0 0.0
    %517 = vmatprep.subr.mxu0 0.0
    %518 = vmatpush1.msra.mxu0 0.0
    %519 = vmatprep.subr.mxu0 0.0
    %520 = vmatpush1.msra.mxu0 0.0
    %521 = vmatprep.subr.mxu0 0.0
    %522 = vmatpush1.msra.mxu0 0.0
    %523 = vmatprep.subr.mxu0 0.0
    %524 = vmatpush1.msra.mxu0 0.0
    %525 = vmatprep.subr.mxu0 0.0
    %526 = vmatpush1.msra.mxu0 0.0
    %527 = vmatprep.subr.mxu0 0.0
    %528 = vmatpush1.msra.mxu0 0.0
    %529 = vmatprep.subr.mxu0 0.0
    %530 = vmatpush1.msra.mxu0 0.0
    %531 = vmatprep.subr.mxu0 0.0
    %532 = vmatpush1.msra.mxu0 0.0
    %533 = vmatprep.subr.mxu0 0.0
    %534 = vmatpush1.msra.mxu0 0.0
    %535 = vmatprep.subr.mxu0 0.0
    %536 = vmatpush1.msra.mxu0 0.0
    %537 = vmatprep.subr.mxu0 0.0
    %538 = vmatpush1.msra.mxu0 0.0
    %539 = vmatprep.subr.mxu0 0.0
    %540 = vmatpush1.msra.mxu0 0.0
    %541 = vmatprep.subr.mxu0 0.0
    %542 = vmatpush1.msra.mxu0 0.0
    %543 = vmatprep.subr.mxu0 0.0
    %544 = vmatpush1.msra.mxu0 0.0
    %545 = vmatprep.subr.mxu0 0.0
    %546 = vmatpush1.msra.mxu0 0.0
    %547 = vmatprep.subr.mxu0 0.0
    %548 = vmatpush1.msra.mxu0 0.0
    %549 = vmatprep.mubr.f32.mxu0 0.0
    %550 = vmatmul.mubr.f32.gmra.mrb[0].mxu0 %v483
    %v551 = vpop.f32.mrb[0].mxu0
    %v552 = vadd.f32 %v70, %v551
    %v553 = vpop.f32.mrb[0].mxu0
    %554 = vdwg.mxu0
    %v555 = vmul.f32 %v478, 0.9
    %v556 = vadd.f32 %v555, %v552
    %vm557 = vcmp.gt.f32.partialorder %v556, 1.0
    %v558 = vsel %vm557, 1, 0
    %v559 = vcvt.s32.f32 %v558
    %v560 = vsub.f32 %v556, %v559
    %v561 = vadd.f32 %v479, %v559
    %s562 = scalar_lea.vmem [#allocation2], 48
    %v563 = vld [vmem:[%s562] sm:$0xff]
    %v565 = vsel %vm72, %v563, 0
    %567 = vmatprep.subr.mxu0 0.0
    %568 = vmatpush1.msra.mxu0 %v62
    %569 = vmatprep.subr.mxu0 0.0
    %570 = vmatpush1.msra.mxu0 %v63
    %571 = vmatprep.subr.mxu0 0.0
    %572 = vmatpush1.msra.mxu0 0.0
    %573 = vmatprep.subr.mxu0 0.0
    %574 = vmatpush1.msra.mxu0 0.0
    %575 = vmatprep.subr.mxu0 0.0
    %576 = vmatpush1.msra.mxu0 0.0
    %577 = vmatprep.subr.mxu0 0.0
    %578 = vmatpush1.msra.mxu0 0.0
    %579 = vmatprep.subr.mxu0 0.0
    %580 = vmatpush1.msra.mxu0 0.0
    %581 = vmatprep.subr.mxu0 0.0
    %582 = vmatpush1.msra.mxu0 0.0
    %583 = vmatprep.subr.mxu0 0.0
    %584 = vmatpush1.msra.mxu0 0.0
    %585 = vmatprep.subr.mxu0 0.0
    %586 = vmatpush1.msra.mxu0 0.0
    %587 = vmatprep.subr.mxu0 0.0
    %588 = vmatpush1.msra.mxu0 0.0
    %589 = vmatprep.subr.mxu0 0.0
    %590 = vmatpush1.msra.mxu0 0.0
    %591 = vmatprep.subr.mxu0 0.0
    %592 = vmatpush1.msra.mxu0 0.0
    %593 = vmatprep.subr.mxu0 0.0
    %594 = vmatpush1.msra.mxu0 0.0
    %595 = vmatprep.subr.mxu0 0.0
    %596 = vmatpush1.msra.mxu0 0.0
    %597 = vmatprep.subr.mxu0 0.0
    %598 = vmatpush1.msra.mxu0 0.0
    %599 = vmatprep.subr.mxu0 0.0
    %600 = vmatpush1.msra.mxu0 0.0
    %601 = vmatprep.subr.mxu0 0.0
    %602 = vmatpush1.msra.mxu0 0.0
    %603 = vmatprep.subr.mxu0 0.0
    %604 = vmatpush1.msra.mxu0 0.0
    %605 = vmatprep.subr.mxu0 0.0
    %606 = vmatpush1.msra.mxu0 0.0
    %607 = vmatprep.subr.mxu0 0.0
    %608 = vmatpush1.msra.mxu0 0.0
    %609 = vmatprep.subr.mxu0 0.0
    %610 = vmatpush1.msra.mxu0 0.0
    %611 = vmatprep.subr.mxu0 0.0
    %612 = vmatpush1.msra.mxu0 0.0
    %613 = vmatprep.subr.mxu0 0.0
    %614 = vmatpush1.msra.mxu0 0.0
    %615 = vmatprep.subr.mxu0 0.0
    %616 = vmatpush1.msra.mxu0 0.0
    %617 = vmatprep.subr.mxu0 0.0
    %618 = vmatpush1.msra.mxu0 0.0
    %619 = vmatprep.subr.mxu0 0.0
    %620 = vmatpush1.msra.mxu0 0.0
    %621 = vmatprep.subr.mxu0 0.0
    %622 = vmatpush1.msra.mxu0 0.0
    %623 = vmatprep.subr.mxu0 0.0
    %624 = vmatpush1.msra.mxu0 0.0
    %625 = vmatprep.subr.mxu0 0.0
    %626 = vmatpush1.msra.mxu0 0.0
    %627 = vmatprep.subr.mxu0 0.0
    %628 = vmatpush1.msra.mxu0 0.0
    %629 = vmatprep.subr.mxu0 0.0
    %630 = vmatpush1.msra.mxu0 0.0
    %631 = vmatprep.mubr.f32.mxu0 0.0
    %632 = vmatmul.mubr.f32.gmra.mrb[0].mxu0 %v565
    %v633 = vpop.f32.mrb[0].mxu0
    %v634 = vadd.f32 %v70, %v633
    %v635 = vpop.f32.mrb[0].mxu0
    %636 = vdwg.mxu0
    %v637 = vmul.f32 %v560, 0.9
    %v638 = vadd.f32 %v637, %v634
    %vm639 = vcmp.gt.f32.partialorder %v638, 1.0
    %v640 = vsel %vm639, 1, 0
    %v641 = vcvt.s32.f32 %v640
    %v642 = vsub.f32 %v638, %v641
    %v643 = vadd.f32 %v561, %v641
    %s644 = scalar_lea.vmem [#allocation2], 56
    %v645 = vld [vmem:[%s644] sm:$0xff]
    %v647 = vsel %vm72, %v645, 0
    %649 = vmatprep.subr.mxu0 0.0
    %650 = vmatpush1.msra.mxu0 %v62
    %651 = vmatprep.subr.mxu0 0.0
    %652 = vmatpush1.msra.mxu0 %v63
    %653 = vmatprep.subr.mxu0 0.0
    %654 = vmatpush1.msra.mxu0 0.0
    %655 = vmatprep.subr.mxu0 0.0
    %656 = vmatpush1.msra.mxu0 0.0
    %657 = vmatprep.subr.mxu0 0.0
    %658 = vmatpush1.msra.mxu0 0.0
    %659 = vmatprep.subr.mxu0 0.0
    %660 = vmatpush1.msra.mxu0 0.0
    %661 = vmatprep.subr.mxu0 0.0
    %662 = vmatpush1.msra.mxu0 0.0
    %663 = vmatprep.subr.mxu0 0.0
    %664 = vmatpush1.msra.mxu0 0.0
    %665 = vmatprep.subr.mxu0 0.0
    %666 = vmatpush1.msra.mxu0 0.0
    %667 = vmatprep.subr.mxu0 0.0
    %668 = vmatpush1.msra.mxu0 0.0
    %669 = vmatprep.subr.mxu0 0.0
    %670 = vmatpush1.msra.mxu0 0.0
    %671 = vmatprep.subr.mxu0 0.0
    %672 = vmatpush1.msra.mxu0 0.0
    %673 = vmatprep.subr.mxu0 0.0
    %674 = vmatpush1.msra.mxu0 0.0
    %675 = vmatprep.subr.mxu0 0.0
    %676 = vmatpush1.msra.mxu0 0.0
    %677 = vmatprep.subr.mxu0 0.0
    %678 = vmatpush1.msra.mxu0 0.0
    %679 = vmatprep.subr.mxu0 0.0
    %680 = vmatpush1.msra.mxu0 0.0
    %681 = vmatprep.subr.mxu0 0.0
    %682 = vmatpush1.msra.mxu0 0.0
    %683 = vmatprep.subr.mxu0 0.0
    %684 = vmatpush1.msra.mxu0 0.0
    %685 = vmatprep.subr.mxu0 0.0
    %686 = vmatpush1.msra.mxu0 0.0
    %687 = vmatprep.subr.mxu0 0.0
    %688 = vmatpush1.msra.mxu0 0.0
    %689 = vmatprep.subr.mxu0 0.0
    %690 = vmatpush1.msra.mxu0 0.0
    %691 = vmatprep.subr.mxu0 0.0
    %692 = vmatpush1.msra.mxu0 0.0
    %693 = vmatprep.subr.mxu0 0.0
    %694 = vmatpush1.msra.mxu0 0.0
    %695 = vmatprep.subr.mxu0 0.0
    %696 = vmatpush1.msra.mxu0 0.0
    %697 = vmatprep.subr.mxu0 0.0
    %698 = vmatpush1.msra.mxu0 0.0
    %699 = vmatprep.subr.mxu0 0.0
    %700 = vmatpush1.msra.mxu0 0.0
    %701 = vmatprep.subr.mxu0 0.0
    %702 = vmatpush1.msra.mxu0 0.0
    %703 = vmatprep.subr.mxu0 0.0
    %704 = vmatpush1.msra.mxu0 0.0
    %705 = vmatprep.subr.mxu0 0.0
    %706 = vmatpush1.msra.mxu0 0.0
    %707 = vmatprep.subr.mxu0 0.0
    %708 = vmatpush1.msra.mxu0 0.0
    %709 = vmatprep.subr.mxu0 0.0
    %710 = vmatpush1.msra.mxu0 0.0
    %711 = vmatprep.subr.mxu0 0.0
    %712 = vmatpush1.msra.mxu0 0.0
    %713 = vmatprep.mubr.f32.mxu0 0.0
    %714 = vmatmul.mubr.f32.gmra.mrb[0].mxu0 %v647
    %v715 = vpop.f32.mrb[0].mxu0
    %v716 = vadd.f32 %v70, %v715
    %v717 = vpop.f32.mrb[0].mxu0
    %718 = vdwg.mxu0
    %v719 = vmul.f32 %v642, 0.9
    %v720 = vadd.f32 %v719, %v716
    %vm721 = vcmp.gt.f32.partialorder %v720, 1.0
    %v722 = vsel %vm721, 1, 0
    %v723 = vcvt.s32.f32 %v722
    %v724 = vadd.f32 %v643, %v723
    %v725 = vld [vmem:[#allocation7] sm:$0xff]
    %v726 = vld [vmem:[#allocation7 + $0x8] sm:$0xff]
    %v727 = vld [vmem:[#allocation7 + $0x10] sm:$0xff]
    %v728 = vld [vmem:[#allocation7 + $0x18] sm:$0xff]
    %v729 = vld [vmem:[#allocation7 + $0x20] sm:$0xff]
    %v730 = vld [vmem:[#allocation7 + $0x28] sm:$0xff]
    %v731 = vld [vmem:[#allocation7 + $0x30] sm:$0xff]
    %v732 = vld [vmem:[#allocation7 + $0x38] sm:$0xff]
    %v733 = vld [vmem:[#allocation7 + $0x40] sm:$0xff]
    %v734 = vld [vmem:[#allocation7 + $0x48] sm:$0xff]
    %v735 = vld [vmem:[#allocation7 + $0x50] sm:$0xff]
    %v736 = vld [vmem:[#allocation7 + $0x58] sm:$0xff]
    %v737 = vld [vmem:[#allocation7 + $0x60] sm:$0xff]
    %v738 = vld [vmem:[#allocation7 + $0x68] sm:$0xff]
    %v739 = vld [vmem:[#allocation7 + $0x70] sm:$0xff]
    %v740 = vld [vmem:[#allocation7 + $0x78] sm:$0xff]
    %v741 = vld [vmem:[%s4] sm:$0x1]
    %v743 = vlaneseq
    %v744 = vshrl.u32 %v743, 7
    %v745 = vsub.s32 0, %v744
    %v746 = vrot.slane %v741, %v745
    %748 = vmatprep.subr.mxu0 0.0
    %749 = vmatpush1.msra.mxu0 %v725
    %750 = vmatprep.subr.mxu0 0.0
    %751 = vmatpush1.msra.mxu0 %v726
    %752 = vmatprep.subr.mxu0 0.0
    %753 = vmatpush1.msra.mxu0 %v727
    %754 = vmatprep.subr.mxu0 0.0
    %755 = vmatpush1.msra.mxu0 %v728
    %756 = vmatprep.subr.mxu0 0.0
    %757 = vmatpush1.msra.mxu0 %v729
    %758 = vmatprep.subr.mxu0 0.0
    %759 = vmatpush1.msra.mxu0 %v730
    %760 = vmatprep.subr.mxu0 0.0
    %761 = vmatpush1.msra.mxu0 %v731
    %762 = vmatprep.subr.mxu0 0.0
    %763 = vmatpush1.msra.mxu0 %v732
    %764 = vmatprep.subr.mxu0 0.0
    %765 = vmatpush1.msra.mxu0 %v733
    %766 = vmatprep.subr.mxu0 0.0
    %767 = vmatpush1.msra.mxu0 %v734
    %768 = vmatprep.subr.mxu0 0.0
    %769 = vmatpush1.msra.mxu0 %v735
    %770 = vmatprep.subr.mxu0 0.0
    %771 = vmatpush1.msra.mxu0 %v736
    %772 = vmatprep.subr.mxu0 0.0
    %773 = vmatpush1.msra.mxu0 %v737
    %774 = vmatprep.subr.mxu0 0.0
    %775 = vmatpush1.msra.mxu0 %v738
    %776 = vmatprep.subr.mxu0 0.0
    %777 = vmatpush1.msra.mxu0 %v739
    %778 = vmatprep.subr.mxu0 0.0
    %779 = vmatpush1.msra.mxu0 %v740
    %780 = vmatprep.subr.mxu0 0.0
    %781 = vmatpush1.msra.mxu0 0.0
    %782 = vmatprep.subr.mxu0 0.0
    %783 = vmatpush1.msra.mxu0 0.0
    %784 = vmatprep.subr.mxu0 0.0
    %785 = vmatpush1.msra.mxu0 0.0
    %786 = vmatprep.subr.mxu0 0.0
    %787 = vmatpush1.msra.mxu0 0.0
    %788 = vmatprep.subr.mxu0 0.0
    %789 = vmatpush1.msra.mxu0 0.0
    %790 = vmatprep.subr.mxu0 0.0
    %791 = vmatpush1.msra.mxu0 0.0
    %792 = vmatprep.subr.mxu0 0.0
    %793 = vmatpush1.msra.mxu0 0.0
    %794 = vmatprep.subr.mxu0 0.0
    %795 = vmatpush1.msra.mxu0 0.0
    %796 = vmatprep.subr.mxu0 0.0
    %797 = vmatpush1.msra.mxu0 0.0
    %798 = vmatprep.subr.mxu0 0.0
    %799 = vmatpush1.msra.mxu0 0.0
    %800 = vmatprep.subr.mxu0 0.0
    %801 = vmatpush1.msra.mxu0 0.0
    %802 = vmatprep.subr.mxu0 0.0
    %803 = vmatpush1.msra.mxu0 0.0
    %804 = vmatprep.subr.mxu0 0.0
    %805 = vmatpush1.msra.mxu0 0.0
    %806 = vmatprep.subr.mxu0 0.0
    %807 = vmatpush1.msra.mxu0 0.0
    %808 = vmatprep.subr.mxu0 0.0
    %809 = vmatpush1.msra.mxu0 0.0
    %810 = vmatprep.subr.mxu0 0.0
    %811 = vmatpush1.msra.mxu0 0.0
    %812 = vmatprep.mubr.f32.mxu0 0.0
    %813 = vmatmul.mubr.f32.gmra.mrb[0].mxu0 %v724
    %v814 = vpop.f32.mrb[0].mxu0
    %v815 = vadd.f32 %v746, %v814
    %v816 = vpop.f32.mrb[0].mxu0
    %817 = vdwg.mxu0
    %818 = vmax.xlane.f32.xlu0 %v815
    %v819 = vpop.xlane.xlu0 %818
    %v820 = vsub.f32 %v815, %v819
    %v821 = vmul.f32 %v820, 1.442695
    %v822 = vpow.pop %v821
    %823 = vadd.xlane.f32.xlu0 %v822
    %v824 = vpop.xlane.xlu0 %823
    %v825 = vlog2.pop %v824
    %v826 = vmul.f32 %v825, 0.6931472
    %v827 = vsub.f32 %v820, %v826
    %828 = vst [vmem:[#allocation8] sm:$0xff] %v827
    // Predicated region
    $region34: #{tpu_custom_call.1} parent=1 // pred_check
      _
    $region35: #{tpu_custom_call.1} parent=1 // pred_check_branch
      %830 = sbr.rel (0) target = $region37
    $region36: #{tpu_custom_call.1} parent=1 // pred_region
      %s832 = ssub.s32 128, 128
      %833 = vsyncadd [#allocation4], %s832
      %s835 = sshll.u32 [#allocation8], 4
      %s836 = int_to_ptr.vmem [resolvable:$true] %s835
      %838 = dma.vmem_to_hbm [thread:$0]  %s836, 128, %s5, [#allocation4]
    $region37: #{tpu_custom_call.1} parent=1 // pred_fallthru
      _
    // Predicated region
    $region38: #{tpu_custom_call.1} parent=1 // pred_check
      _
    $region39: #{tpu_custom_call.1} parent=1 // pred_check_branch
      %840 = sbr.rel (0) target = $region41
    $region40: #{tpu_custom_call.1} parent=1 // pred_region
      %841 = dma.done [#allocation4], 128
    $region41: #{tpu_custom_call.1} parent=1 // pred_fallthru
      _
    %842 = vsyncpa [#allocation3], 1
    %843 = vsyncpa [#allocation6], 1
    %844 = vsyncpa [#allocation4], 1

// kernel: tpu_custom_call.1
$region0: #{tpu_custom_call.1}
  #allocation0 [shape = 'u32[]', space=smem, size = 0x4, offset = 0x4, fixed_abs, tag = 'smem constant byte address 0x4 - core index']
  #allocation1 [shape = 'u32[144,128]{1,0:T(1,128)}', space=vmem, size = 0x12000, scoped, tag = 'internal scratch']
  %s0 = inlined_call_operand.hbm [shape: f32[8,8,16], index: 0, kind: input, shape index: {}]
  %s1 = inlined_call_operand.hbm [shape: f32[16,128], index: 1, kind: input, shape index: {}]
  %s2 = inlined_call_operand.vmem [shape: f32[1,128], index: 2, kind: input, shape index: {}]
  %s3 = inlined_call_operand.hbm [shape: f32[128,128], index: 3, kind: input, shape index: {}]
  %s4 = inlined_call_operand.vmem [shape: f32[1,128], index: 4, kind: input, shape index: {}]
  %s5 = inlined_call_operand.hbm [shape: f32[8,128], index: 5, kind: output, shape index: {}]
  %s6 = sld [smem:[#allocation0]]
  $region42: #{tpu_custom_call.1} parent=0
    _
  %s8 = ssub.s32 1, %s6
  %s9 = scalar_select 0, %s8, %s6
  $region1: #{tpu_custom_call.1} parent=0
    #allocation2 [shape = 'u8[32768]{0}', space=vmem, size = 0x8000, scoped, tag = 'input window, operand 0, single buffered']
    #allocation3 [shape = 's32[1]{0}', space=sflag, size = 0x4, scoped, tag = 'scoped memory for tpu_custom_call.1']
    #allocation4 [shape = 's32[1]{0}', space=sflag, size = 0x4, scoped, tag = 'scoped memory for tpu_custom_call.1']
    #allocation5 [shape = 'u8[8192]{0}', space=vmem, size = 0x2000, scoped, tag = 'input window, operand 1, single buffered']
    #allocation6 [shape = 's32[1]{0}', space=sflag, size = 0x4, scoped, tag = 'scoped memory for tpu_custom_call.1']
    #allocation7 [shape = 'u8[65536]{0}', space=vmem, size = 0x10000, scoped, tag = 'input window, operand 3, single buffered']
    #allocation8 [shape = 'u8[4096]{0}', space=vmem, size = 0x1000, scoped, tag = 'output window, operand 0, single buffered']
    %10 = vsyncpa [#allocation3], 0
    %11 = vsyncpa [#allocation6], 0
    %12 = vsyncpa [#allocation4], 0
    // Predicated region
    $region2: #{tpu_custom_call.1} parent=1 // pred_check
      _
    $region3: #{tpu_custom_call.1} parent=1 // pred_check_branch
      %14 = sbr.rel (0) target = $region5
    $region4: #{tpu_custom_call.1} parent=1 // pred_region
      %s16 = ssub.s32 1024, 1024
      %17 = vsyncadd [#allocation3], %s16
      %s18 = sshll.u32 [#allocation2], 4
      %s19 = int_to_ptr.vmem [resolvable:$true] %s18
      %24 = dma.hbm_to_vmem [thread:$0]  %s0, 1024, %s19, [#allocation3], 128, 128, 8
    $region5: #{tpu_custom_call.1} parent=1 // pred_fallthru
      _
    // Predicated region
    $region6: #{tpu_custom_call.1} parent=1 // pred_check
      _
    $region7: #{tpu_custom_call.1} parent=1 // pred_check_branch
      %26 = sbr.rel (0) target = $region9
    $region8: #{tpu_custom_call.1} parent=1 // pred_region
      %s28 = ssub.s32 256, 256
      %29 = vsyncadd [#allocation6], %s28
      %s30 = sshll.u32 [#allocation5], 4
      %s31 = int_to_ptr.vmem [resolvable:$true] %s30
      %36 = dma.hbm_to_vmem [thread:$0]  %s1, 256, %s31, [#allocation6], 128, 128, 8
    $region9: #{tpu_custom_call.1} parent=1 // pred_fallthru
      _
    // Predicated region
    $region10: #{tpu_custom_call.1} parent=1 // pred_check
      _
    $region11: #{tpu_custom_call.1} parent=1 // pred_check_branch
      %38 = sbr.rel (0) target = $region13
    $region12: #{tpu_custom_call.1} parent=1 // pred_region
      _
    $region13: #{tpu_custom_call.1} parent=1 // pred_fallthru
      _
    // Predicated region
    $region14: #{tpu_custom_call.1} parent=1 // pred_check
      _
    $region15: #{tpu_custom_call.1} parent=1 // pred_check_branch
      %40 = sbr.rel (0) target = $region17
    $region16: #{tpu_custom_call.1} parent=1 // pred_region
      %s42 = ssub.s32 2048, 2048
      %43 = vsyncadd [#allocation6], %s42
      %s44 = sshll.u32 [#allocation7], 4
      %s45 = int_to_ptr.vmem [resolvable:$true] %s44
      %50 = dma.hbm_to_vmem [thread:$0]  %s3, 2048, %s45, [#allocation6], 128, 128, 8
    $region17: #{tpu_custom_call.1} parent=1 // pred_fallthru
      _
    // Predicated region
    $region18: #{tpu_custom_call.1} parent=1 // pred_check
      _
    $region19: #{tpu_custom_call.1} parent=1 // pred_check_branch
      %52 = sbr.rel (0) target = $region21
    $region20: #{tpu_custom_call.1} parent=1 // pred_region
      _
    $region21: #{tpu_custom_call.1} parent=1 // pred_fallthru
      _
    // Predicated region
    $region22: #{tpu_custom_call.1} parent=1 // pred_check
      _
    $region23: #{tpu_custom_call.1} parent=1 // pred_check_branch
      %54 = sbr.rel (0) target = $region25
    $region24: #{tpu_custom_call.1} parent=1 // pred_region
      %55 = dma.done [#allocation3], 1024
    $region25: #{tpu_custom_call.1} parent=1 // pred_fallthru
      _
    // Predicated region
    $region26: #{tpu_custom_call.1} parent=1 // pred_check
      _
    $region27: #{tpu_custom_call.1} parent=1 // pred_check_branch
      %57 = sbr.rel (0) target = $region29
    $region28: #{tpu_custom_call.1} parent=1 // pred_region
      %58 = dma.done [#allocation6], 256
    $region29: #{tpu_custom_call.1} parent=1 // pred_fallthru
      _
    // Predicated region
    $region30: #{tpu_custom_call.1} parent=1 // pred_check
      _
    $region31: #{tpu_custom_call.1} parent=1 // pred_check_branch
      %60 = sbr.rel (0) target = $region33
    $region32: #{tpu_custom_call.1} parent=1 // pred_region
      %61 = dma.done [#allocation6], 2048
    $region33: #{tpu_custom_call.1} parent=1 // pred_fallthru
      _
    %v62 = vld [vmem:[#allocation5] sm:$0xff]
    %v63 = vld [vmem:[#allocation5 + $0x8] sm:$0xff]
    %v64 = vld [vmem:[%s2] sm:$0x1]
    %v65 = vld [vmem:[#allocation2] sm:$0xff]
    %v67 = vlaneseq
    %v68 = vshrl.u32 %v67, 7
    %v69 = vsub.s32 0, %v68
    %v70 = vrot.slane %v64, %v69
    %vm72 = vcmask 130048
    %v74 = vsel %vm72, %v65, 0
    %76 = vmatprep.subr.mxu0 0.0
    %77 = vmatpush1.msra.mxu0 %v62
    %78 = vmatprep.subr.mxu0 0.0
    %79 = vmatpush1.msra.mxu0 %v63
    %80 = vmatprep.subr.mxu0 0.0
    %81 = vmatpush1.msra.mxu0 0.0
    %82 = vmatprep.subr.mxu0 0.0
    %83 = vmatpush1.msra.mxu0 0.0
    %84 = vmatprep.subr.mxu0 0.0
    %85 = vmatpush1.msra.mxu0 0.0
    %86 = vmatprep.subr.mxu0 0.0
    %87 = vmatpush1.msra.mxu0 0.0
    %88 = vmatprep.subr.mxu0 0.0
    %89 = vmatpush1.msra.mxu0 0.0
    %90 = vmatprep.subr.mxu0 0.0
    %91 = vmatpush1.msra.mxu0 0.0
    %92 = vmatprep.subr.mxu0 0.0
    %93 = vmatpush1.msra.mxu0 0.0
    %94 = vmatprep.subr.mxu0 0.0
    %95 = vmatpush1.msra.mxu0 0.0
    %96 = vmatprep.subr.mxu0 0.0
    %97 = vmatpush1.msra.mxu0 0.0
    %98 = vmatprep.subr.mxu0 0.0
    %99 = vmatpush1.msra.mxu0 0.0
    %100 = vmatprep.subr.mxu0 0.0
    %101 = vmatpush1.msra.mxu0 0.0
    %102 = vmatprep.subr.mxu0 0.0
    %103 = vmatpush1.msra.mxu0 0.0
    %104 = vmatprep.subr.mxu0 0.0
    %105 = vmatpush1.msra.mxu0 0.0
    %106 = vmatprep.subr.mxu0 0.0
    %107 = vmatpush1.msra.mxu0 0.0
    %108 = vmatprep.subr.mxu0 0.0
    %109 = vmatpush1.msra.mxu0 0.0
    %110 = vmatprep.subr.mxu0 0.0
    %111 = vmatpush1.msra.mxu0 0.0
    %112 = vmatprep.subr.mxu0 0.0
    %113 = vmatpush1.msra.mxu0 0.0
    %114 = vmatprep.subr.mxu0 0.0
    %115 = vmatpush1.msra.mxu0 0.0
    %116 = vmatprep.subr.mxu0 0.0
    %117 = vmatpush1.msra.mxu0 0.0
    %118 = vmatprep.subr.mxu0 0.0
    %119 = vmatpush1.msra.mxu0 0.0
    %120 = vmatprep.subr.mxu0 0.0
    %121 = vmatpush1.msra.mxu0 0.0
    %122 = vmatprep.subr.mxu0 0.0
    %123 = vmatpush1.msra.mxu0 0.0
    %124 = vmatprep.subr.mxu0 0.0
    %125 = vmatpush1.msra.mxu0 0.0
    %126 = vmatprep.subr.mxu0 0.0
    %127 = vmatpush1.msra.mxu0 0.0
    %128 = vmatprep.subr.mxu0 0.0
    %129 = vmatpush1.msra.mxu0 0.0
    %130 = vmatprep.subr.mxu0 0.0
    %131 = vmatpush1.msra.mxu0 0.0
    %132 = vmatprep.subr.mxu0 0.0
    %133 = vmatpush1.msra.mxu0 0.0
    %134 = vmatprep.subr.mxu0 0.0
    %135 = vmatpush1.msra.mxu0 0.0
    %136 = vmatprep.subr.mxu0 0.0
    %137 = vmatpush1.msra.mxu0 0.0
    %138 = vmatprep.subr.mxu0 0.0
    %139 = vmatpush1.msra.mxu0 0.0
    %140 = vmatprep.mubr.f32.mxu0 0.0
    %141 = vmatmul.mubr.f32.gmra.mrb[0].mxu0 %v74
    %v142 = vpop.f32.mrb[0].mxu0
    %v143 = vadd.f32 %v70, %v142
    %v144 = vpop.f32.mrb[0].mxu0
    %145 = vdwg.mxu0
    %v146 = vadd.f32 %v143, 0.0
    %vm147 = vcmp.gt.f32.partialorder %v146, 1.0
    %v148 = vsel %vm147, 1, 0
    %v149 = vcvt.s32.f32 %v148
    %v150 = vsub.f32 %v146, %v149
    %v151 = vadd.f32 %v149, 0.0
    %s152 = scalar_lea.vmem [#allocation2], 8
    %v153 = vld [vmem:[%s152] sm:$0xff]
    %v155 = vsel %vm72, %v153, 0
    %157 = vmatprep.subr.mxu0 0.0
    %158 = vmatpush1.msra.mxu0 %v62
    %159 = vmatprep.subr.mxu0 0.0
    %160 = vmatpush1.msra.mxu0 %v63
    %161 = vmatprep.subr.mxu0 0.0
    %162 = vmatpush1.msra.mxu0 0.0
    %163 = vmatprep.subr.mxu0 0.0
    %164 = vmatpush1.msra.mxu0 0.0
    %165 = vmatprep.subr.mxu0 0.0
    %166 = vmatpush1.msra.mxu0 0.0
    %167 = vmatprep.subr.mxu0 0.0
    %168 = vmatpush1.msra.mxu0 0.0
    %169 = vmatprep.subr.mxu0 0.0
    %170 = vmatpush1.msra.mxu0 0.0
    %171 = vmatprep.subr.mxu0 0.0
    %172 = vmatpush1.msra.mxu0 0.0
    %173 = vmatprep.subr.mxu0 0.0
    %174 = vmatpush1.msra.mxu0 0.0
    %175 = vmatprep.subr.mxu0 0.0
    %176 = vmatpush1.msra.mxu0 0.0
    %177 = vmatprep.subr.mxu0 0.0
    %178 = vmatpush1.msra.mxu0 0.0
    %179 = vmatprep.subr.mxu0 0.0
    %180 = vmatpush1.msra.mxu0 0.0
    %181 = vmatprep.subr.mxu0 0.0
    %182 = vmatpush1.msra.mxu0 0.0
    %183 = vmatprep.subr.mxu0 0.0
    %184 = vmatpush1.msra.mxu0 0.0
    %185 = vmatprep.subr.mxu0 0.0
    %186 = vmatpush1.msra.mxu0 0.0
    %187 = vmatprep.subr.mxu0 0.0
    %188 = vmatpush1.msra.mxu0 0.0
    %189 = vmatprep.subr.mxu0 0.0
    %190 = vmatpush1.msra.mxu0 0.0
    %191 = vmatprep.subr.mxu0 0.0
    %192 = vmatpush1.msra.mxu0 0.0
    %193 = vmatprep.subr.mxu0 0.0
    %194 = vmatpush1.msra.mxu0 0.0
    %195 = vmatprep.subr.mxu0 0.0
    %196 = vmatpush1.msra.mxu0 0.0
    %197 = vmatprep.subr.mxu0 0.0
    %198 = vmatpush1.msra.mxu0 0.0
    %199 = vmatprep.subr.mxu0 0.0
    %200 = vmatpush1.msra.mxu0 0.0
    %201 = vmatprep.subr.mxu0 0.0
    %202 = vmatpush1.msra.mxu0 0.0
    %203 = vmatprep.subr.mxu0 0.0
    %204 = vmatpush1.msra.mxu0 0.0
    %205 = vmatprep.subr.mxu0 0.0
    %206 = vmatpush1.msra.mxu0 0.0
    %207 = vmatprep.subr.mxu0 0.0
    %208 = vmatpush1.msra.mxu0 0.0
    %209 = vmatprep.subr.mxu0 0.0
    %210 = vmatpush1.msra.mxu0 0.0
    %211 = vmatprep.subr.mxu0 0.0
    %212 = vmatpush1.msra.mxu0 0.0
    %213 = vmatprep.subr.mxu0 0.0
    %214 = vmatpush1.msra.mxu0 0.0
    %215 = vmatprep.subr.mxu0 0.0
    %216 = vmatpush1.msra.mxu0 0.0
    %217 = vmatprep.subr.mxu0 0.0
    %218 = vmatpush1.msra.mxu0 0.0
    %219 = vmatprep.subr.mxu0 0.0
    %220 = vmatpush1.msra.mxu0 0.0
    %221 = vmatprep.mubr.f32.mxu0 0.0
    %222 = vmatmul.mubr.f32.gmra.mrb[0].mxu0 %v155
    %v223 = vpop.f32.mrb[0].mxu0
    %v224 = vadd.f32 %v70, %v223
    %v225 = vpop.f32.mrb[0].mxu0
    %226 = vdwg.mxu0
    %v227 = vmul.f32 %v150, 0.9
    %v228 = vadd.f32 %v227, %v224
    %vm229 = vcmp.gt.f32.partialorder %v228, 1.0
    %v230 = vsel %vm229, 1, 0
    %v231 = vcvt.s32.f32 %v230
    %v232 = vsub.f32 %v228, %v231
    %v233 = vadd.f32 %v151, %v231
    %s234 = scalar_lea.vmem [#allocation2], 16
    %v235 = vld [vmem:[%s234] sm:$0xff]
    %v237 = vsel %vm72, %v235, 0
    %239 = vmatprep.subr.mxu0 0.0
    %240 = vmatpush1.msra.mxu0 %v62
    %241 = vmatprep.subr.mxu0 0.0
    %242 = vmatpush1.msra.mxu0 %v63
    %243 = vmatprep.subr.mxu0 0.0
    %244 = vmatpush1.msra.mxu0 0.0
    %245 = vmatprep.subr.mxu0 0.0
    %246 = vmatpush1.msra.mxu0 0.0
    %247 = vmatprep.subr.mxu0 0.0
    %248 = vmatpush1.msra.mxu0 0.0
    %249 = vmatprep.subr.mxu0 0.0
    %250 = vmatpush1.msra.mxu0 0.0
    %251 = vmatprep.subr.mxu0 0.0
    %252 = vmatpush1.msra.mxu0 0.0
    %253 = vmatprep.subr.mxu0 0.0
    %254 = vmatpush1.msra.mxu0 0.0
    %255 = vmatprep.subr.mxu0 0.0
    %256 = vmatpush1.msra.mxu0 0.0
    %257 = vmatprep.subr.mxu0 0.0
    %258 = vmatpush1.msra.mxu0 0.0
    %259 = vmatprep.subr.mxu0 0.0
    %260 = vmatpush1.msra.mxu0 0.0
    %261 = vmatprep.subr.mxu0 0.0
    %262 = vmatpush1.msra.mxu0 0.0
    %263 = vmatprep.subr.mxu0 0.0
    %264 = vmatpush1.msra.mxu0 0.0
    %265 = vmatprep.subr.mxu0 0.0
    %266 = vmatpush1.msra.mxu0 0.0
    %267 = vmatprep.subr.mxu0 0.0
    %268 = vmatpush1.msra.mxu0 0.0
    %269 = vmatprep.subr.mxu0 0.0
    %270 = vmatpush1.msra.mxu0 0.0
    %271 = vmatprep.subr.mxu0 0.0
    %272 = vmatpush1.msra.mxu0 0.0
    %273 = vmatprep.subr.mxu0 0.0
    %274 = vmatpush1.msra.mxu0 0.0
    %275 = vmatprep.subr.mxu0 0.0
    %276 = vmatpush1.msra.mxu0 0.0
    %277 = vmatprep.subr.mxu0 0.0
    %278 = vmatpush1.msra.mxu0 0.0
    %279 = vmatprep.subr.mxu0 0.0
    %280 = vmatpush1.msra.mxu0 0.0
    %281 = vmatprep.subr.mxu0 0.0
    %282 = vmatpush1.msra.mxu0 0.0
    %283 = vmatprep.subr.mxu0 0.0
    %284 = vmatpush1.msra.mxu0 0.0
    %285 = vmatprep.subr.mxu0 0.0
    %286 = vmatpush1.msra.mxu0 0.0
    %287 = vmatprep.subr.mxu0 0.0
    %288 = vmatpush1.msra.mxu0 0.0
    %289 = vmatprep.subr.mxu0 0.0
    %290 = vmatpush1.msra.mxu0 0.0
    %291 = vmatprep.subr.mxu0 0.0
    %292 = vmatpush1.msra.mxu0 0.0
    %293 = vmatprep.subr.mxu0 0.0
    %294 = vmatpush1.msra.mxu0 0.0
    %295 = vmatprep.subr.mxu0 0.0
    %296 = vmatpush1.msra.mxu0 0.0
    %297 = vmatprep.subr.mxu0 0.0
    %298 = vmatpush1.msra.mxu0 0.0
    %299 = vmatprep.subr.mxu0 0.0
    %300 = vmatpush1.msra.mxu0 0.0
    %301 = vmatprep.subr.mxu0 0.0
    %302 = vmatpush1.msra.mxu0 0.0
    %303 = vmatprep.mubr.f32.mxu0 0.0
    %304 = vmatmul.mubr.f32.gmra.mrb[0].mxu0 %v237
    %v305 = vpop.f32.mrb[0].mxu0
    %v306 = vadd.f32 %v70, %v305
    %v307 = vpop.f32.mrb[0].mxu0
    %308 = vdwg.mxu0
    %v309 = vmul.f32 %v232, 0.9
    %v310 = vadd.f32 %v309, %v306
    %vm311 = vcmp.gt.f32.partialorder %v310, 1.0
    %v312 = vsel %vm311, 1, 0
    %v313 = vcvt.s32.f32 %v312
    %v314 = vsub.f32 %v310, %v313
    %v315 = vadd.f32 %v233, %v313
    %s316 = scalar_lea.vmem [#allocation2], 24
    %v317 = vld [vmem:[%s316] sm:$0xff]
    %v319 = vsel %vm72, %v317, 0
    %321 = vmatprep.subr.mxu0 0.0
    %322 = vmatpush1.msra.mxu0 %v62
    %323 = vmatprep.subr.mxu0 0.0
    %324 = vmatpush1.msra.mxu0 %v63
    %325 = vmatprep.subr.mxu0 0.0
    %326 = vmatpush1.msra.mxu0 0.0
    %327 = vmatprep.subr.mxu0 0.0
    %328 = vmatpush1.msra.mxu0 0.0
    %329 = vmatprep.subr.mxu0 0.0
    %330 = vmatpush1.msra.mxu0 0.0
    %331 = vmatprep.subr.mxu0 0.0
    %332 = vmatpush1.msra.mxu0 0.0
    %333 = vmatprep.subr.mxu0 0.0
    %334 = vmatpush1.msra.mxu0 0.0
    %335 = vmatprep.subr.mxu0 0.0
    %336 = vmatpush1.msra.mxu0 0.0
    %337 = vmatprep.subr.mxu0 0.0
    %338 = vmatpush1.msra.mxu0 0.0
    %339 = vmatprep.subr.mxu0 0.0
    %340 = vmatpush1.msra.mxu0 0.0
    %341 = vmatprep.subr.mxu0 0.0
    %342 = vmatpush1.msra.mxu0 0.0
    %343 = vmatprep.subr.mxu0 0.0
    %344 = vmatpush1.msra.mxu0 0.0
    %345 = vmatprep.subr.mxu0 0.0
    %346 = vmatpush1.msra.mxu0 0.0
    %347 = vmatprep.subr.mxu0 0.0
    %348 = vmatpush1.msra.mxu0 0.0
    %349 = vmatprep.subr.mxu0 0.0
    %350 = vmatpush1.msra.mxu0 0.0
    %351 = vmatprep.subr.mxu0 0.0
    %352 = vmatpush1.msra.mxu0 0.0
    %353 = vmatprep.subr.mxu0 0.0
    %354 = vmatpush1.msra.mxu0 0.0
    %355 = vmatprep.subr.mxu0 0.0
    %356 = vmatpush1.msra.mxu0 0.0
    %357 = vmatprep.subr.mxu0 0.0
    %358 = vmatpush1.msra.mxu0 0.0
    %359 = vmatprep.subr.mxu0 0.0
    %360 = vmatpush1.msra.mxu0 0.0
    %361 = vmatprep.subr.mxu0 0.0
    %362 = vmatpush1.msra.mxu0 0.0
    %363 = vmatprep.subr.mxu0 0.0
    %364 = vmatpush1.msra.mxu0 0.0
    %365 = vmatprep.subr.mxu0 0.0
    %366 = vmatpush1.msra.mxu0 0.0
    %367 = vmatprep.subr.mxu0 0.0
    %368 = vmatpush1.msra.mxu0 0.0
    %369 = vmatprep.subr.mxu0 0.0
    %370 = vmatpush1.msra.mxu0 0.0
    %371 = vmatprep.subr.mxu0 0.0
    %372 = vmatpush1.msra.mxu0 0.0
    %373 = vmatprep.subr.mxu0 0.0
    %374 = vmatpush1.msra.mxu0 0.0
    %375 = vmatprep.subr.mxu0 0.0
    %376 = vmatpush1.msra.mxu0 0.0
    %377 = vmatprep.subr.mxu0 0.0
    %378 = vmatpush1.msra.mxu0 0.0
    %379 = vmatprep.subr.mxu0 0.0
    %380 = vmatpush1.msra.mxu0 0.0
    %381 = vmatprep.subr.mxu0 0.0
    %382 = vmatpush1.msra.mxu0 0.0
    %383 = vmatprep.subr.mxu0 0.0
    %384 = vmatpush1.msra.mxu0 0.0
    %385 = vmatprep.mubr.f32.mxu0 0.0
    %386 = vmatmul.mubr.f32.gmra.mrb[0].mxu0 %v319
    %v387 = vpop.f32.mrb[0].mxu0
    %v388 = vadd.f32 %v70, %v387
    %v389 = vpop.f32.mrb[0].mxu0
    %390 = vdwg.mxu0
    %v391 = vmul.f32 %v314, 0.9
    %v392 = vadd.f32 %v391, %v388
    %vm393 = vcmp.gt.f32.partialorder %v392, 1.0
    %v394 = vsel %vm393, 1, 0
    %v395 = vcvt.s32.f32 %v394
    %v396 = vsub.f32 %v392, %v395
    %v397 = vadd.f32 %v315, %v395
    %s398 = scalar_lea.vmem [#allocation2], 32
    %v399 = vld [vmem:[%s398] sm:$0xff]
    %v401 = vsel %vm72, %v399, 0
    %403 = vmatprep.subr.mxu0 0.0
    %404 = vmatpush1.msra.mxu0 %v62
    %405 = vmatprep.subr.mxu0 0.0
    %406 = vmatpush1.msra.mxu0 %v63
    %407 = vmatprep.subr.mxu0 0.0
    %408 = vmatpush1.msra.mxu0 0.0
    %409 = vmatprep.subr.mxu0 0.0
    %410 = vmatpush1.msra.mxu0 0.0
    %411 = vmatprep.subr.mxu0 0.0
    %412 = vmatpush1.msra.mxu0 0.0
    %413 = vmatprep.subr.mxu0 0.0
    %414 = vmatpush1.msra.mxu0 0.0
    %415 = vmatprep.subr.mxu0 0.0
    %416 = vmatpush1.msra.mxu0 0.0
    %417 = vmatprep.subr.mxu0 0.0
    %418 = vmatpush1.msra.mxu0 0.0
    %419 = vmatprep.subr.mxu0 0.0
    %420 = vmatpush1.msra.mxu0 0.0
    %421 = vmatprep.subr.mxu0 0.0
    %422 = vmatpush1.msra.mxu0 0.0
    %423 = vmatprep.subr.mxu0 0.0
    %424 = vmatpush1.msra.mxu0 0.0
    %425 = vmatprep.subr.mxu0 0.0
    %426 = vmatpush1.msra.mxu0 0.0
    %427 = vmatprep.subr.mxu0 0.0
    %428 = vmatpush1.msra.mxu0 0.0
    %429 = vmatprep.subr.mxu0 0.0
    %430 = vmatpush1.msra.mxu0 0.0
    %431 = vmatprep.subr.mxu0 0.0
    %432 = vmatpush1.msra.mxu0 0.0
    %433 = vmatprep.subr.mxu0 0.0
    %434 = vmatpush1.msra.mxu0 0.0
    %435 = vmatprep.subr.mxu0 0.0
    %436 = vmatpush1.msra.mxu0 0.0
    %437 = vmatprep.subr.mxu0 0.0
    %438 = vmatpush1.msra.mxu0 0.0
    %439 = vmatprep.subr.mxu0 0.0
    %440 = vmatpush1.msra.mxu0 0.0
    %441 = vmatprep.subr.mxu0 0.0
    %442 = vmatpush1.msra.mxu0 0.0
    %443 = vmatprep.subr.mxu0 0.0
    %444 = vmatpush1.msra.mxu0 0.0
    %445 = vmatprep.subr.mxu0 0.0
    %446 = vmatpush1.msra.mxu0 0.0
    %447 = vmatprep.subr.mxu0 0.0
    %448 = vmatpush1.msra.mxu0 0.0
    %449 = vmatprep.subr.mxu0 0.0
    %450 = vmatpush1.msra.mxu0 0.0
    %451 = vmatprep.subr.mxu0 0.0
    %452 = vmatpush1.msra.mxu0 0.0
    %453 = vmatprep.subr.mxu0 0.0
    %454 = vmatpush1.msra.mxu0 0.0
    %455 = vmatprep.subr.mxu0 0.0
    %456 = vmatpush1.msra.mxu0 0.0
    %457 = vmatprep.subr.mxu0 0.0
    %458 = vmatpush1.msra.mxu0 0.0
    %459 = vmatprep.subr.mxu0 0.0
    %460 = vmatpush1.msra.mxu0 0.0
    %461 = vmatprep.subr.mxu0 0.0
    %462 = vmatpush1.msra.mxu0 0.0
    %463 = vmatprep.subr.mxu0 0.0
    %464 = vmatpush1.msra.mxu0 0.0
    %465 = vmatprep.subr.mxu0 0.0
    %466 = vmatpush1.msra.mxu0 0.0
    %467 = vmatprep.mubr.f32.mxu0 0.0
    %468 = vmatmul.mubr.f32.gmra.mrb[0].mxu0 %v401
    %v469 = vpop.f32.mrb[0].mxu0
    %v470 = vadd.f32 %v70, %v469
    %v471 = vpop.f32.mrb[0].mxu0
    %472 = vdwg.mxu0
    %v473 = vmul.f32 %v396, 0.9
    %v474 = vadd.f32 %v473, %v470
    %vm475 = vcmp.gt.f32.partialorder %v474, 1.0
    %v476 = vsel %vm475, 1, 0
    %v477 = vcvt.s32.f32 %v476
    %v478 = vsub.f32 %v474, %v477
    %v479 = vadd.f32 %v397, %v477
    %s480 = scalar_lea.vmem [#allocation2], 40
    %v481 = vld [vmem:[%s480] sm:$0xff]
    %v483 = vsel %vm72, %v481, 0
    %485 = vmatprep.subr.mxu0 0.0
    %486 = vmatpush1.msra.mxu0 %v62
    %487 = vmatprep.subr.mxu0 0.0
    %488 = vmatpush1.msra.mxu0 %v63
    %489 = vmatprep.subr.mxu0 0.0
    %490 = vmatpush1.msra.mxu0 0.0
    %491 = vmatprep.subr.mxu0 0.0
    %492 = vmatpush1.msra.mxu0 0.0
    %493 = vmatprep.subr.mxu0 0.0
    %494 = vmatpush1.msra.mxu0 0.0
    %495 = vmatprep.subr.mxu0 0.0
    %496 = vmatpush1.msra.mxu0 0.0
    %497 = vmatprep.subr.mxu0 0.0
    %498 = vmatpush1.msra.mxu0 0.0
    %499 = vmatprep.subr.mxu0 0.0
    %500 = vmatpush1.msra.mxu0 0.0
    %501 = vmatprep.subr.mxu0 0.0
    %502 = vmatpush1.msra.mxu0 0.0
    %503 = vmatprep.subr.mxu0 0.0
    %504 = vmatpush1.msra.mxu0 0.0
    %505 = vmatprep.subr.mxu0 0.0
    %506 = vmatpush1.msra.mxu0 0.0
    %507 = vmatprep.subr.mxu0 0.0
    %508 = vmatpush1.msra.mxu0 0.0
    %509 = vmatprep.subr.mxu0 0.0
    %510 = vmatpush1.msra.mxu0 0.0
    %511 = vmatprep.subr.mxu0 0.0
    %512 = vmatpush1.msra.mxu0 0.0
    %513 = vmatprep.subr.mxu0 0.0
    %514 = vmatpush1.msra.mxu0 0.0
    %515 = vmatprep.subr.mxu0 0.0
    %516 = vmatpush1.msra.mxu0 0.0
    %517 = vmatprep.subr.mxu0 0.0
    %518 = vmatpush1.msra.mxu0 0.0
    %519 = vmatprep.subr.mxu0 0.0
    %520 = vmatpush1.msra.mxu0 0.0
    %521 = vmatprep.subr.mxu0 0.0
    %522 = vmatpush1.msra.mxu0 0.0
    %523 = vmatprep.subr.mxu0 0.0
    %524 = vmatpush1.msra.mxu0 0.0
    %525 = vmatprep.subr.mxu0 0.0
    %526 = vmatpush1.msra.mxu0 0.0
    %527 = vmatprep.subr.mxu0 0.0
    %528 = vmatpush1.msra.mxu0 0.0
    %529 = vmatprep.subr.mxu0 0.0
    %530 = vmatpush1.msra.mxu0 0.0
    %531 = vmatprep.subr.mxu0 0.0
    %532 = vmatpush1.msra.mxu0 0.0
    %533 = vmatprep.subr.mxu0 0.0
    %534 = vmatpush1.msra.mxu0 0.0
    %535 = vmatprep.subr.mxu0 0.0
    %536 = vmatpush1.msra.mxu0 0.0
    %537 = vmatprep.subr.mxu0 0.0
    %538 = vmatpush1.msra.mxu0 0.0
    %539 = vmatprep.subr.mxu0 0.0
    %540 = vmatpush1.msra.mxu0 0.0
    %541 = vmatprep.subr.mxu0 0.0
    %542 = vmatpush1.msra.mxu0 0.0
    %543 = vmatprep.subr.mxu0 0.0
    %544 = vmatpush1.msra.mxu0 0.0
    %545 = vmatprep.subr.mxu0 0.0
    %546 = vmatpush1.msra.mxu0 0.0
    %547 = vmatprep.subr.mxu0 0.0
    %548 = vmatpush1.msra.mxu0 0.0
    %549 = vmatprep.mubr.f32.mxu0 0.0
    %550 = vmatmul.mubr.f32.gmra.mrb[0].mxu0 %v483
    %v551 = vpop.f32.mrb[0].mxu0
    %v552 = vadd.f32 %v70, %v551
    %v553 = vpop.f32.mrb[0].mxu0
    %554 = vdwg.mxu0
    %v555 = vmul.f32 %v478, 0.9
    %v556 = vadd.f32 %v555, %v552
    %vm557 = vcmp.gt.f32.partialorder %v556, 1.0
    %v558 = vsel %vm557, 1, 0
    %v559 = vcvt.s32.f32 %v558
    %v560 = vsub.f32 %v556, %v559
    %v561 = vadd.f32 %v479, %v559
    %s562 = scalar_lea.vmem [#allocation2], 48
    %v563 = vld [vmem:[%s562] sm:$0xff]
    %v565 = vsel %vm72, %v563, 0
    %567 = vmatprep.subr.mxu0 0.0
    %568 = vmatpush1.msra.mxu0 %v62
    %569 = vmatprep.subr.mxu0 0.0
    %570 = vmatpush1.msra.mxu0 %v63
    %571 = vmatprep.subr.mxu0 0.0
    %572 = vmatpush1.msra.mxu0 0.0
    %573 = vmatprep.subr.mxu0 0.0
    %574 = vmatpush1.msra.mxu0 0.0
    %575 = vmatprep.subr.mxu0 0.0
    %576 = vmatpush1.msra.mxu0 0.0
    %577 = vmatprep.subr.mxu0 0.0
    %578 = vmatpush1.msra.mxu0 0.0
    %579 = vmatprep.subr.mxu0 0.0
    %580 = vmatpush1.msra.mxu0 0.0
    %581 = vmatprep.subr.mxu0 0.0
    %582 = vmatpush1.msra.mxu0 0.0
    %583 = vmatprep.subr.mxu0 0.0
    %584 = vmatpush1.msra.mxu0 0.0
    %585 = vmatprep.subr.mxu0 0.0
    %586 = vmatpush1.msra.mxu0 0.0
    %587 = vmatprep.subr.mxu0 0.0
    %588 = vmatpush1.msra.mxu0 0.0
    %589 = vmatprep.subr.mxu0 0.0
    %590 = vmatpush1.msra.mxu0 0.0
    %591 = vmatprep.subr.mxu0 0.0
    %592 = vmatpush1.msra.mxu0 0.0
    %593 = vmatprep.subr.mxu0 0.0
    %594 = vmatpush1.msra.mxu0 0.0
    %595 = vmatprep.subr.mxu0 0.0
    %596 = vmatpush1.msra.mxu0 0.0
    %597 = vmatprep.subr.mxu0 0.0
    %598 = vmatpush1.msra.mxu0 0.0
    %599 = vmatprep.subr.mxu0 0.0
    %600 = vmatpush1.msra.mxu0 0.0
    %601 = vmatprep.subr.mxu0 0.0
    %602 = vmatpush1.msra.mxu0 0.0
    %603 = vmatprep.subr.mxu0 0.0
    %604 = vmatpush1.msra.mxu0 0.0
    %605 = vmatprep.subr.mxu0 0.0
    %606 = vmatpush1.msra.mxu0 0.0
    %607 = vmatprep.subr.mxu0 0.0
    %608 = vmatpush1.msra.mxu0 0.0
    %609 = vmatprep.subr.mxu0 0.0
    %610 = vmatpush1.msra.mxu0 0.0
    %611 = vmatprep.subr.mxu0 0.0
    %612 = vmatpush1.msra.mxu0 0.0
    %613 = vmatprep.subr.mxu0 0.0
    %614 = vmatpush1.msra.mxu0 0.0
    %615 = vmatprep.subr.mxu0 0.0
    %616 = vmatpush1.msra.mxu0 0.0
    %617 = vmatprep.subr.mxu0 0.0
    %618 = vmatpush1.msra.mxu0 0.0
    %619 = vmatprep.subr.mxu0 0.0
    %620 = vmatpush1.msra.mxu0 0.0
    %621 = vmatprep.subr.mxu0 0.0
    %622 = vmatpush1.msra.mxu0 0.0
    %623 = vmatprep.subr.mxu0 0.0
    %624 = vmatpush1.msra.mxu0 0.0
    %625 = vmatprep.subr.mxu0 0.0
    %626 = vmatpush1.msra.mxu0 0.0
    %627 = vmatprep.subr.mxu0 0.0
    %628 = vmatpush1.msra.mxu0 0.0
    %629 = vmatprep.subr.mxu0 0.0
    %630 = vmatpush1.msra.mxu0 0.0
    %631 = vmatprep.mubr.f32.mxu0 0.0
    %632 = vmatmul.mubr.f32.gmra.mrb[0].mxu0 %v565
    %v633 = vpop.f32.mrb[0].mxu0
    %v634 = vadd.f32 %v70, %v633
    %v635 = vpop.f32.mrb[0].mxu0
    %636 = vdwg.mxu0
    %v637 = vmul.f32 %v560, 0.9
    %v638 = vadd.f32 %v637, %v634
    %vm639 = vcmp.gt.f32.partialorder %v638, 1.0
    %v640 = vsel %vm639, 1, 0
    %v641 = vcvt.s32.f32 %v640
    %v642 = vsub.f32 %v638, %v641
    %v643 = vadd.f32 %v561, %v641
    %s644 = scalar_lea.vmem [#allocation2], 56
    %v645 = vld [vmem:[%s644] sm:$0xff]
    %v647 = vsel %vm72, %v645, 0
    %649 = vmatprep.subr.mxu0 0.0
    %650 = vmatpush1.msra.mxu0 %v62
    %651 = vmatprep.subr.mxu0 0.0
    %652 = vmatpush1.msra.mxu0 %v63
    %653 = vmatprep.subr.mxu0 0.0
    %654 = vmatpush1.msra.mxu0 0.0
    %655 = vmatprep.subr.mxu0 0.0
    %656 = vmatpush1.msra.mxu0 0.0
    %657 = vmatprep.subr.mxu0 0.0
    %658 = vmatpush1.msra.mxu0 0.0
    %659 = vmatprep.subr.mxu0 0.0
    %660 = vmatpush1.msra.mxu0 0.0
    %661 = vmatprep.subr.mxu0 0.0
    %662 = vmatpush1.msra.mxu0 0.0
    %663 = vmatprep.subr.mxu0 0.0
    %664 = vmatpush1.msra.mxu0 0.0
    %665 = vmatprep.subr.mxu0 0.0
    %666 = vmatpush1.msra.mxu0 0.0
    %667 = vmatprep.subr.mxu0 0.0
    %668 = vmatpush1.msra.mxu0 0.0
    %669 = vmatprep.subr.mxu0 0.0
    %670 = vmatpush1.msra.mxu0 0.0
    %671 = vmatprep.subr.mxu0 0.0
    %672 = vmatpush1.msra.mxu0 0.0
    %673 = vmatprep.subr.mxu0 0.0
    %674 = vmatpush1.msra.mxu0 0.0
    %675 = vmatprep.subr.mxu0 0.0
    %676 = vmatpush1.msra.mxu0 0.0
    %677 = vmatprep.subr.mxu0 0.0
    %678 = vmatpush1.msra.mxu0 0.0
    %679 = vmatprep.subr.mxu0 0.0
    %680 = vmatpush1.msra.mxu0 0.0
    %681 = vmatprep.subr.mxu0 0.0
    %682 = vmatpush1.msra.mxu0 0.0
    %683 = vmatprep.subr.mxu0 0.0
    %684 = vmatpush1.msra.mxu0 0.0
    %685 = vmatprep.subr.mxu0 0.0
    %686 = vmatpush1.msra.mxu0 0.0
    %687 = vmatprep.subr.mxu0 0.0
    %688 = vmatpush1.msra.mxu0 0.0
    %689 = vmatprep.subr.mxu0 0.0
    %690 = vmatpush1.msra.mxu0 0.0
    %691 = vmatprep.subr.mxu0 0.0
    %692 = vmatpush1.msra.mxu0 0.0
    %693 = vmatprep.subr.mxu0 0.0
    %694 = vmatpush1.msra.mxu0 0.0
    %695 = vmatprep.subr.mxu0 0.0
    %696 = vmatpush1.msra.mxu0 0.0
    %697 = vmatprep.subr.mxu0 0.0
    %698 = vmatpush1.msra.mxu0 0.0
    %699 = vmatprep.subr.mxu0 0.0
    %700 = vmatpush1.msra.mxu0 0.0
    %701 = vmatprep.subr.mxu0 0.0
    %702 = vmatpush1.msra.mxu0 0.0
    %703 = vmatprep.subr.mxu0 0.0
    %704 = vmatpush1.msra.mxu0 0.0
    %705 = vmatprep.subr.mxu0 0.0
    %706 = vmatpush1.msra.mxu0 0.0
    %707 = vmatprep.subr.mxu0 0.0
    %708 = vmatpush1.msra.mxu0 0.0
    %709 = vmatprep.subr.mxu0 0.0
    %710 = vmatpush1.msra.mxu0 0.0
    %711 = vmatprep.subr.mxu0 0.0
    %712 = vmatpush1.msra.mxu0 0.0
    %713 = vmatprep.mubr.f32.mxu0 0.0
    %714 = vmatmul.mubr.f32.gmra.mrb[0].mxu0 %v647
    %v715 = vpop.f32.mrb[0].mxu0
    %v716 = vadd.f32 %v70, %v715
    %v717 = vpop.f32.mrb[0].mxu0
    %718 = vdwg.mxu0
    %v719 = vmul.f32 %v642, 0.9
    %v720 = vadd.f32 %v719, %v716
    %vm721 = vcmp.gt.f32.partialorder %v720, 1.0
    %v722 = vsel %vm721, 1, 0
    %v723 = vcvt.s32.f32 %v722
    %v724 = vadd.f32 %v643, %v723
    %v725 = vld [vmem:[#allocation7] sm:$0xff]
    %v726 = vld [vmem:[#allocation7 + $0x8] sm:$0xff]
    %v727 = vld [vmem:[#allocation7 + $0x10] sm:$0xff]
    %v728 = vld [vmem:[#allocation7 + $0x18] sm:$0xff]
    %v729 = vld [vmem:[#allocation7 + $0x20] sm:$0xff]
    %v730 = vld [vmem:[#allocation7 + $0x28] sm:$0xff]
    %v731 = vld [vmem:[#allocation7 + $0x30] sm:$0xff]
    %v732 = vld [vmem:[#allocation7 + $0x38] sm:$0xff]
    %v733 = vld [vmem:[#allocation7 + $0x40] sm:$0xff]
    %v734 = vld [vmem:[#allocation7 + $0x48] sm:$0xff]
    %v735 = vld [vmem:[#allocation7 + $0x50] sm:$0xff]
    %v736 = vld [vmem:[#allocation7 + $0x58] sm:$0xff]
    %v737 = vld [vmem:[#allocation7 + $0x60] sm:$0xff]
    %v738 = vld [vmem:[#allocation7 + $0x68] sm:$0xff]
    %v739 = vld [vmem:[#allocation7 + $0x70] sm:$0xff]
    %v740 = vld [vmem:[#allocation7 + $0x78] sm:$0xff]
    %v741 = vld [vmem:[%s4] sm:$0x1]
    %v743 = vlaneseq
    %v744 = vshrl.u32 %v743, 7
    %v745 = vsub.s32 0, %v744
    %v746 = vrot.slane %v741, %v745
    %748 = vmatprep.subr.mxu0 0.0
    %749 = vmatpush1.msra.mxu0 %v725
    %750 = vmatprep.subr.mxu0 0.0
    %751 = vmatpush1.msra.mxu0 %v726
    %752 = vmatprep.subr.mxu0 0.0
    %753 = vmatpush1.msra.mxu0 %v727
    %754 = vmatprep.subr.mxu0 0.0
    %755 = vmatpush1.msra.mxu0 %v728
    %756 = vmatprep.subr.mxu0 0.0
    %757 = vmatpush1.msra.mxu0 %v729
    %758 = vmatprep.subr.mxu0 0.0
    %759 = vmatpush1.msra.mxu0 %v730
    %760 = vmatprep.subr.mxu0 0.0
    %761 = vmatpush1.msra.mxu0 %v731
    %762 = vmatprep.subr.mxu0 0.0
    %763 = vmatpush1.msra.mxu0 %v732
    %764 = vmatprep.subr.mxu0 0.0
    %765 = vmatpush1.msra.mxu0 %v733
    %766 = vmatprep.subr.mxu0 0.0
    %767 = vmatpush1.msra.mxu0 %v734
    %768 = vmatprep.subr.mxu0 0.0
    %769 = vmatpush1.msra.mxu0 %v735
    %770 = vmatprep.subr.mxu0 0.0
    %771 = vmatpush1.msra.mxu0 %v736
    %772 = vmatprep.subr.mxu0 0.0
    %773 = vmatpush1.msra.mxu0 %v737
    %774 = vmatprep.subr.mxu0 0.0
    %775 = vmatpush1.msra.mxu0 %v738
    %776 = vmatprep.subr.mxu0 0.0
    %777 = vmatpush1.msra.mxu0 %v739
    %778 = vmatprep.subr.mxu0 0.0
    %779 = vmatpush1.msra.mxu0 %v740
    %780 = vmatprep.subr.mxu0 0.0
    %781 = vmatpush1.msra.mxu0 0.0
    %782 = vmatprep.subr.mxu0 0.0
    %783 = vmatpush1.msra.mxu0 0.0
    %784 = vmatprep.subr.mxu0 0.0
    %785 = vmatpush1.msra.mxu0 0.0
    %786 = vmatprep.subr.mxu0 0.0
    %787 = vmatpush1.msra.mxu0 0.0
    %788 = vmatprep.subr.mxu0 0.0
    %789 = vmatpush1.msra.mxu0 0.0
    %790 = vmatprep.subr.mxu0 0.0
    %791 = vmatpush1.msra.mxu0 0.0
    %792 = vmatprep.subr.mxu0 0.0
    %793 = vmatpush1.msra.mxu0 0.0
    %794 = vmatprep.subr.mxu0 0.0
    %795 = vmatpush1.msra.mxu0 0.0
    %796 = vmatprep.subr.mxu0 0.0
    %797 = vmatpush1.msra.mxu0 0.0
    %798 = vmatprep.subr.mxu0 0.0
    %799 = vmatpush1.msra.mxu0 0.0
    %800 = vmatprep.subr.mxu0 0.0
    %801 = vmatpush1.msra.mxu0 0.0
    %802 = vmatprep.subr.mxu0 0.0
    %803 = vmatpush1.msra.mxu0 0.0
    %804 = vmatprep.subr.mxu0 0.0
    %805 = vmatpush1.msra.mxu0 0.0
    %806 = vmatprep.subr.mxu0 0.0
    %807 = vmatpush1.msra.mxu0 0.0
    %808 = vmatprep.subr.mxu0 0.0
    %809 = vmatpush1.msra.mxu0 0.0
    %810 = vmatprep.subr.mxu0 0.0
    %811 = vmatpush1.msra.mxu0 0.0
    %812 = vmatprep.mubr.f32.mxu0 0.0
    %813 = vmatmul.mubr.f32.gmra.mrb[0].mxu0 %v724
    %v814 = vpop.f32.mrb[0].mxu0
    %v815 = vadd.f32 %v746, %v814
    %v816 = vpop.f32.mrb[0].mxu0
    %817 = vdwg.mxu0
    %818 = vmax.xlane.f32.xlu0 %v815
    %v819 = vpop.xlane.xlu0 %818
    %v820 = vsub.f32 %v815, %v819
    %v821 = vmul.f32 %v820, 1.442695
    %v822 = vpow.pop %v821
    %823 = vadd.xlane.f32.xlu0 %v822
    %v824 = vpop.xlane.xlu0 %823
    %v825 = vlog2.pop %v824
    %v826 = vmul.f32 %v825, 0.6931472
    %v827 = vsub.f32 %v820, %v826
    %828 = vst [vmem:[#allocation8] sm:$0xff] %v827
    // Predicated region
    $region34: #{tpu_custom_call.1} parent=1 // pred_check
      _
    $region35: #{tpu_custom_call.1} parent=1 // pred_check_branch
      %830 = sbr.rel (0) target = $region37
    $region36: #{tpu_custom_call.1} parent=1 // pred_region
      %s832 = ssub.s32 128, 128
      %833 = vsyncadd [#allocation4], %s832
      %s835 = sshll.u32 [#allocation8], 4
      %s836 = int_to_ptr.vmem [resolvable:$true] %s835
      %838 = dma.vmem_to_hbm [thread:$0]  %s836, 128, %s5, [#allocation4]
    $region37: #{tpu_custom_call.1} parent=1 // pred_fallthru
      _
    // Predicated region
    $region38: #{tpu_custom_call.1} parent=1 // pred_check
      _
    $region39: #{tpu_custom_call.1} parent=1 // pred_check_branch
      %840 = sbr.rel (0) target = $region41
    $region40: #{tpu_custom_call.1} parent=1 // pred_region
      %841 = dma.done [#allocation4], 128
    $region41: #{tpu_custom_call.1} parent=1 // pred_fallthru
      _
    %842 = vsyncpa [#allocation3], 1
    %843 = vsyncpa [#allocation6], 1
    %844 = vsyncpa [#allocation4], 1

</llo_original>
